<compile_context>
chip_gen: v6e
topology: v6e:2x2x1
jax: 0.10.0
libtpu: 0.0.40
codegen_flags: <defaults>
</compile_context>

<pallas_src>
import math
import jax
import jax.numpy as jnp
from jax.experimental import pallas as pl
from jax.experimental.pallas import tpu as pltpu

# Fixed-embedding table sizes (freq='h' -> no minute table, minute_x == 0.0)
HOUR_SZ, WEEKDAY_SZ, DAY_SZ, MONTH_SZ = 24, 7, 32, 13
TBL = HOUR_SZ + WEEKDAY_SZ + DAY_SZ + MONTH_SZ          # 76 concatenated rows
OFF_HOUR, OFF_WD, OFF_DAY, OFF_MON = 0, 24, 31, 63      # row offsets in big table

LANE = 128
SUB = 8


def _sincos_table(n, d_model):
    """sin/cos table used by PositionalEmbedding and FixedEmbedding."""
    pos = jnp.arange(n, dtype=jnp.float32)[:, None]
    div = jnp.exp(jnp.arange(0, d_model, 2, dtype=jnp.float32)
                  * (-(math.log(10000.0) / d_model)))
    ang = pos * div
    tbl = jnp.zeros((n, d_model), jnp.float32)
    tbl = tbl.at[:, 0::2].set(jnp.sin(ang))
    tbl = tbl.at[:, 1::2].set(jnp.cos(ang))
    return tbl


def _round_up(v, m):
    return (v + m - 1) // m * m


# --------------------------------------------------------------------------- #
# Kernel
# --------------------------------------------------------------------------- #
def data_embedding_kernel(x_ref, marks_ref, w_ref, table_ref, pe_ref, o_ref):
    Bt, L, c_in = x_ref.shape
    d_pad = o_ref.shape[-1]                             # lane-dense (128-multiple)
    M = Bt * L

    x = x_ref[...]                                      # [Bt, L, c_in] f32

    # Circular time neighbours per batch: x[(t-1) mod L] and x[(t+1) mod L].
    x_prev = jnp.roll(x, 1, axis=1)
    x_next = jnp.roll(x, -1, axis=1)

    # Flatten batch*time into the MXU M dimension.
    x2 = x.reshape(M, c_in)
    xp2 = x_prev.reshape(M, c_in)
    xn2 = x_next.reshape(M, c_in)

    # --- TokenEmbedding: circular Conv1d(kernel=3, padding=1, bias=False)
    #     as three accumulated per-tap matmuls.
    acc = jnp.dot(xp2, w_ref[0], preferred_element_type=jnp.float32)     # tap k=0
    acc += jnp.dot(x2, w_ref[1], preferred_element_type=jnp.float32)     # tap k=1
    acc += jnp.dot(xn2, w_ref[2], preferred_element_type=jnp.float32)    # tap k=2

    # --- TemporalEmbedding ('fixed', freq='h'): hour + weekday + day + month.
    # Offsets pre-added in the wrapper; ranges are disjoint so OR of one-hots
    # == their sum and a single MXU dot performs all four gathers.
    # TODO(synk): out-of-range mark values contribute zero here instead of the
    # reference's gather semantics; inputs are assumed in-range (as upstream).
    m = marks_ref[...].reshape(M, 4)                    # int32, offsets applied
    col = jax.lax.broadcasted_iota(jnp.int32, (M, TBL), 1)
    hot = ((col == m[:, 0:1]) | (col == m[:, 1:2])
           | (col == m[:, 2:3]) | (col == m[:, 3:4]))
    acc += jnp.dot(hot.astype(jnp.float32), table_ref[...],
                   preferred_element_type=jnp.float32)

    # --- + PositionalEmbedding (broadcast over batch); dropout identity (eval).
    out = acc.reshape(Bt, L, d_pad) + pe_ref[...][None, :, :]
    o_ref[...] = out.astype(o_ref.dtype)


# --------------------------------------------------------------------------- #
# Tiling policy
# --------------------------------------------------------------------------- #
def _step_vmem_bytes(bt, L, c_in, d_pad):
    """Padded-(8,128)-layout VMEM footprint of one grid step, in bytes."""
    L8 = _round_up(L, SUB)
    m8 = _round_up(bt * L, SUB)
    # Pipelined tiles (double-buffered by the grid pipeline).
    x_tile = bt * L8 * _round_up(c_in, LANE) * 4
    mk_tile = bt * L8 * _round_up(4, LANE) * 4
    out_tile = bt * L8 * d_pad * 4
    pipelined = 2 * (x_tile + mk_tile + out_tile)
    # Grid-invariant operands; charged double-buffered to stay conservative
    # even if the Buffered(1) single-buffer request is not honoured.
    w_tile = 3 * _round_up(c_in, SUB) * d_pad * 4
    tb_tile = _round_up(TBL, SUB) * d_pad * 4
    pe_tile = L8 * d_pad * 4
    resident = 2 * (w_tile + tb_tile + pe_tile)
    # In-kernel intermediates: rolled copies, iota/one-hot (128-lane padded),
    # f32 accumulator and the pre-store output value.
    interm = m8 * (2 * d_pad + 6 * LANE) * 4
    return pipelined + resident + interm


def _tpu_policy():
    """Returns (per-step VMEM budget bytes, min parallel grid steps, vmem cap)."""
    kind = ""
    try:
        kind = jax.devices()[0].device_kind.lower()
    except Exception:
        pass
    if ("v5e" in kind) or ("v5 lite" in kind) or ("v5lite" in kind):
        return 14 << 20, 1, 100 << 20          # v5e: 128 MiB physical, 16 MiB scoped default
    if ("v6" in kind) or ("trillium" in kind):
        return 20 << 20, 1, 100 << 20          # v6e: 128 MiB physical, 32 MiB scoped default
    if ("7x" in kind) or ("v7" in kind):
        return 16 << 20, 2, 48 << 20           # v7x: 64 MiB physical, 2 TCs -> need >=2 steps
    return 12 << 20, 2, 48 << 20               # unknown: be conservative


def _choose_batch_tile(B, L, c_in, d_pad, budget_bytes, min_steps):
    """Largest Bt (<= ceil(B/min_steps)) whose padded per-step footprint fits."""
    bt_cap = max(1, pl.cdiv(B, min_steps))
    bt = 1
    for cand in range(1, bt_cap + 1):
        if _step_vmem_bytes(cand, L, c_in, d_pad) > budget_bytes:
            break
        bt = cand
    return bt


# --------------------------------------------------------------------------- #
# Wrapper
# --------------------------------------------------------------------------- #
def data_embedding(x, x_mark, conv_w, tables, pe, out_dtype=jnp.float32):
    """x: [B, L, c_in] f32; x_mark: [B, L, >=4] (month, day, weekday, hour)."""
    B, L, c_in = x.shape
    d_model = conv_w.shape[0]
    d_pad = _round_up(d_model, LANE)            # lane-dense output width

    # Conv1d weight [d_model, c_in, 3] -> per-tap matmul weights [3, c_in, d_pad].
    w_taps = jnp.transpose(conv_w, (2, 1, 0))
    w_taps = jnp.pad(w_taps, ((0, 0), (0, 0), (0, d_pad - d_model)))
    # Concatenated fixed tables (rows: hour 24, weekday 7, day 32, month 13).
    big_table = jnp.concatenate(
        [tables["hour"], tables["weekday"], tables["day"], tables["month"]], axis=0)
    big_table = jnp.pad(big_table, ((0, 0), (0, d_pad - d_model)))
    pe_p = jnp.pad(pe, ((0, 0), (0, d_pad - d_model)))
    # Pre-add per-category row offsets (x_mark cols = month, day, weekday, hour).
    offs = jnp.array([OFF_MON, OFF_DAY, OFF_WD, OFF_HOUR], jnp.int32)
    marks = x_mark[..., :4].astype(jnp.int32) + offs

    budget, min_steps, vmem_cap = _tpu_policy()
    Bt = _choose_batch_tile(B, L, c_in, d_pad, budget, min_steps)
    grid_steps = pl.cdiv(B, Bt)
    B_pad = grid_steps * Bt
    if B_pad > B:                               # pad batch so every block is full
        x = jnp.pad(x, ((0, B_pad - B), (0, 0), (0, 0)))
        marks = jnp.pad(marks, ((0, B_pad - B), (0, 0), (0, 0)))

    vmem_limit = int(min(vmem_cap,
                         max(32 << 20, _step_vmem_bytes(Bt, L, c_in, d_pad) + (4 << 20))))

    def _launch(single_buffer_consts):
        const_kw = ({"pipeline_mode": pl.Buffered(buffer_count=1)}
                    if single_buffer_consts else {})
        in_specs = [
            pl.BlockSpec((Bt, L, c_in), lambda b: (b, 0, 0)),
            pl.BlockSpec((Bt, L, 4), lambda b: (b, 0, 0)),
            # Replicated operands: constant block index -> DMA'd once, resident.
            pl.BlockSpec((3, c_in, d_pad), lambda b: (0, 0, 0), **const_kw),
            pl.BlockSpec((TBL, d_pad), lambda b: (0, 0), **const_kw),
            pl.BlockSpec((L, d_pad), lambda b: (0, 0), **const_kw),
        ]
        return pl.pallas_call(
            data_embedding_kernel,
            out_shape=jax.ShapeDtypeStruct((B_pad, L, d_pad), out_dtype),
            grid=(grid_steps,),
            in_specs=in_specs,
            out_specs=pl.BlockSpec((Bt, L, d_pad), lambda b: (b, 0, 0)),
            compiler_params=pltpu.CompilerParams(
                dimension_semantics=("parallel",),
                vmem_limit_bytes=vmem_limit),
        )(x, marks, w_taps, big_table, pe_p)

    try:
        out = _launch(True)
    except Exception:
        # Fall back if Buffered(1) single-buffering isn't supported here.
        out = _launch(False)

    return out[:B, :, :d_model]                 # drop batch + lane padding


# --------------------------------------------------------------------------- #
# Pure-JAX reference (eval mode) and smoke test
# --------------------------------------------------------------------------- #
def ref_forward(x, x_mark, conv_w, tables, pe):
    B, L, c_in = x.shape
    xp = jnp.concatenate([x[:, -1:, :], x, x[:, :1, :]], axis=1)   # circular pad (1,1)
    val = sum(jnp.einsum("blc,oc->blo", xp[:, k:k + L, :], conv_w[:, :, k])
              for k in range(3))
    m = x_mark[..., :4].astype(jnp.int32)
    temporal = (tables["hour"][m[..., 3]] + tables["weekday"][m[..., 2]]
                + tables["day"][m[..., 1]] + tables["month"][m[..., 0]])
    return val + temporal + pe[None, :L]


if __name__ == "__main__":
    B, L, c_in, d_model = 2, 8, 4, 32
    key = jax.random.PRNGKey(0)
    kx, kw, km = jax.random.split(key, 3)

    # Input series
    x = jax.random.normal(kx, (B, L, c_in), dtype=jnp.float32)

    # Time marks: columns = [month, day, weekday, hour]  (freq='h')
    km0, km1, km2, km3 = jax.random.split(km, 4)
    x_mark = jnp.stack(
        [jax.random.randint(km0, (B, L), 0, MONTH_SZ),
         jax.random.randint(km1, (B, L), 0, DAY_SZ),
         jax.random.randint(km2, (B, L), 0, WEEKDAY_SZ),
         jax.random.randint(km3, (B, L), 0, HOUR_SZ)], axis=-1).astype(jnp.float32)

    # TokenEmbedding conv weight [d_model, c_in, 3], kaiming_normal_(fan_in, leaky_relu)
    fan_in = c_in * 3
    gain = math.sqrt(2.0 / (1.0 + 0.01 ** 2))
    std = gain / math.sqrt(fan_in)
    conv_w = std * jax.random.normal(kw, (d_model, c_in, 3), dtype=jnp.float32)

    # Fixed embedding tables + positional embedding (non-trainable, deterministic)
    tables = {
        "hour": _sincos_table(HOUR_SZ, d_model),
        "weekday": _sincos_table(WEEKDAY_SZ, d_model),
        "day": _sincos_table(DAY_SZ, d_model),
        "month": _sincos_table(MONTH_SZ, d_model),
    }
    pe = _sincos_table(L, d_model)   # PositionalEmbedding pe[:, :L]

    out = data_embedding(x, x_mark, conv_w, tables, pe)
    out = jax.block_until_ready(out)

    ref = ref_forward(x, x_mark, conv_w, tables, pe)
    assert out.shape == (B, L, d_model)
    assert jnp.allclose(out, ref, atol=1e-4, rtol=1e-4), float(jnp.max(jnp.abs(out - ref)))
    print("KERNEL_OK")
</pallas_src>

<mosaic_0001>
module attributes {stable_mosaic.version = 11 : i64} {
  func.func @data_embedding_kernel(%arg0: i32, %arg1: memref<1x8x4xf32, #tpu.memory_space<vmem>>, %arg2: memref<1x8x4xi32, #tpu.memory_space<vmem>>, %arg3: memref<3x4x128xf32, #tpu.memory_space<vmem>>, %arg4: memref<76x128xf32, #tpu.memory_space<vmem>>, %arg5: memref<8x128xf32, #tpu.memory_space<vmem>>, %arg6: memref<1x8x128xf32, #tpu.memory_space<vmem>>) attributes {dimension_semantics = [#tpu.dimension_semantics<parallel>], iteration_bounds = array<i64: 2>, scalar_prefetch = 0 : i64, scratch_operands = 0 : i64, tpu.core_type = #tpu.core_type<tc>, window_params = [{transform_indices = @transform_0, window_bounds = array<i64: 1, 8, 4>}, {transform_indices = @transform_1, window_bounds = array<i64: 1, 8, 4>}, {pipeline_mode = #tpu.pipeline_mode<synchronous>, transform_indices = @transform_2, window_bounds = array<i64: 3, 4, 128>}, {pipeline_mode = #tpu.pipeline_mode<synchronous>, transform_indices = @transform_3, window_bounds = array<i64: 76, 128>}, {pipeline_mode = #tpu.pipeline_mode<synchronous>, transform_indices = @transform_4, window_bounds = array<i64: 8, 128>}, {transform_indices = @transform_5, window_bounds = array<i64: 1, 8, 128>}]} {
    %c0 = arith.constant 0 : index
    %c0_0 = arith.constant 0 : index
    %c0_1 = arith.constant 0 : index
    %0 = vector.load %arg1[%c0, %c0_0, %c0_1] : memref<1x8x4xf32, #tpu.memory_space<vmem>>, vector<1x8x4xf32>
    %1 = vector.extract_strided_slice %0 {offsets = [0, 7, 0], sizes = [1, 1, 4], strides = [1, 1, 1]} : vector<1x8x4xf32> to vector<1x1x4xf32>
    %2 = vector.extract_strided_slice %0 {offsets = [0, 0, 0], sizes = [1, 7, 4], strides = [1, 1, 1]} : vector<1x8x4xf32> to vector<1x7x4xf32>
    %3 = tpu.concatenate %1, %2 in 1 : vector<1x1x4xf32>, vector<1x7x4xf32> -> vector<1x8x4xf32>
    %4 = vector.extract_strided_slice %0 {offsets = [0, 1, 0], sizes = [1, 7, 4], strides = [1, 1, 1]} : vector<1x8x4xf32> to vector<1x7x4xf32>
    %5 = vector.extract_strided_slice %0 {offsets = [0, 0, 0], sizes = [1, 1, 4], strides = [1, 1, 1]} : vector<1x8x4xf32> to vector<1x1x4xf32>
    %6 = tpu.concatenate %4, %5 in 1 : vector<1x7x4xf32>, vector<1x1x4xf32> -> vector<1x8x4xf32>
    %7 = vector.shape_cast %0 : vector<1x8x4xf32> to vector<8x4xf32>
    %8 = vector.shape_cast %3 : vector<1x8x4xf32> to vector<8x4xf32>
    %9 = vector.shape_cast %6 : vector<1x8x4xf32> to vector<8x4xf32>
    %c0_2 = arith.constant 0 : index
    %c0_3 = arith.constant 0 : index
    %c0_4 = arith.constant 0 : index
    %10 = vector.load %arg3[%c0_2, %c0_3, %c0_4] : memref<3x4x128xf32, #tpu.memory_space<vmem>>, vector<1x4x128xf32>
    %11 = vector.shape_cast %10 : vector<1x4x128xf32> to vector<4x128xf32>
    %cst = arith.constant dense<0.000000e+00> : vector<8x128xf32>
    %12 = tpu.matmul %8, %11, %cst {dimension_numbers = #tpu.dot_dimension_numbers<[1], [0], [0], [1], [0, 0, 1, 1], [], []>} : vector<8x4xf32>, vector<4x128xf32>, vector<8x128xf32> -> vector<8x128xf32>
    %c1 = arith.constant 1 : index
    %c0_5 = arith.constant 0 : index
    %c0_6 = arith.constant 0 : index
    %13 = vector.load %arg3[%c1, %c0_5, %c0_6] : memref<3x4x128xf32, #tpu.memory_space<vmem>>, vector<1x4x128xf32>
    %14 = vector.shape_cast %13 : vector<1x4x128xf32> to vector<4x128xf32>
    %cst_7 = arith.constant dense<0.000000e+00> : vector<8x128xf32>
    %15 = tpu.matmul %7, %14, %cst_7 {dimension_numbers = #tpu.dot_dimension_numbers<[1], [0], [0], [1], [0, 0, 1, 1], [], []>} : vector<8x4xf32>, vector<4x128xf32>, vector<8x128xf32> -> vector<8x128xf32>
    %16 = arith.addf %12, %15 : vector<8x128xf32>
    %c2 = arith.constant 2 : index
    %c0_8 = arith.constant 0 : index
    %c0_9 = arith.constant 0 : index
    %17 = vector.load %arg3[%c2, %c0_8, %c0_9] : memref<3x4x128xf32, #tpu.memory_space<vmem>>, vector<1x4x128xf32>
    %18 = vector.shape_cast %17 : vector<1x4x128xf32> to vector<4x128xf32>
    %cst_10 = arith.constant dense<0.000000e+00> : vector<8x128xf32>
    %19 = tpu.matmul %9, %18, %cst_10 {dimension_numbers = #tpu.dot_dimension_numbers<[1], [0], [0], [1], [0, 0, 1, 1], [], []>} : vector<8x4xf32>, vector<4x128xf32>, vector<8x128xf32> -> vector<8x128xf32>
    %20 = arith.addf %16, %19 : vector<8x128xf32>
    %c0_11 = arith.constant 0 : index
    %c0_12 = arith.constant 0 : index
    %c0_13 = arith.constant 0 : index
    %21 = vector.load %arg2[%c0_11, %c0_12, %c0_13] : memref<1x8x4xi32, #tpu.memory_space<vmem>>, vector<1x8x4xi32>
    %22 = vector.shape_cast %21 : vector<1x8x4xi32> to vector<8x4xi32>
    %23 = tpu.iota {dimensions = array<i32: 1>} : vector<8x76xi32>
    %24 = vector.extract_strided_slice %22 {offsets = [0, 0], sizes = [8, 1], strides = [1, 1]} : vector<8x4xi32> to vector<8x1xi32>
    %25 = vector.broadcast %24 : vector<8x1xi32> to vector<8x76xi32>
    %26 = arith.cmpi eq, %23, %25 : vector<8x76xi32>
    %27 = vector.extract_strided_slice %22 {offsets = [0, 1], sizes = [8, 1], strides = [1, 1]} : vector<8x4xi32> to vector<8x1xi32>
    %28 = vector.broadcast %27 : vector<8x1xi32> to vector<8x76xi32>
    %29 = arith.cmpi eq, %23, %28 : vector<8x76xi32>
    %30 = arith.ori %26, %29 : vector<8x76xi1>
    %31 = vector.extract_strided_slice %22 {offsets = [0, 2], sizes = [8, 1], strides = [1, 1]} : vector<8x4xi32> to vector<8x1xi32>
    %32 = vector.broadcast %31 : vector<8x1xi32> to vector<8x76xi32>
    %33 = arith.cmpi eq, %23, %32 : vector<8x76xi32>
    %34 = arith.ori %30, %33 : vector<8x76xi1>
    %35 = vector.extract_strided_slice %22 {offsets = [0, 3], sizes = [8, 1], strides = [1, 1]} : vector<8x4xi32> to vector<8x1xi32>
    %36 = vector.broadcast %35 : vector<8x1xi32> to vector<8x76xi32>
    %37 = arith.cmpi eq, %23, %36 : vector<8x76xi32>
    %38 = arith.ori %34, %37 : vector<8x76xi1>
    %39 = arith.extui %38 : vector<8x76xi1> to vector<8x76xi32>
    %40 = arith.sitofp %39 : vector<8x76xi32> to vector<8x76xf32>
    %c0_14 = arith.constant 0 : index
    %c0_15 = arith.constant 0 : index
    %41 = vector.load %arg4[%c0_14, %c0_15] : memref<76x128xf32, #tpu.memory_space<vmem>>, vector<76x128xf32>
    %cst_16 = arith.constant dense<0.000000e+00> : vector<8x128xf32>
    %42 = tpu.matmul %40, %41, %cst_16 {dimension_numbers = #tpu.dot_dimension_numbers<[1], [0], [0], [1], [0, 0, 1, 1], [], []>} : vector<8x76xf32>, vector<76x128xf32>, vector<8x128xf32> -> vector<8x128xf32>
    %43 = arith.addf %20, %42 : vector<8x128xf32>
    %44 = vector.shape_cast %43 : vector<8x128xf32> to vector<1x8x128xf32>
    %c0_17 = arith.constant 0 : index
    %c0_18 = arith.constant 0 : index
    %45 = vector.load %arg5[%c0_17, %c0_18] : memref<8x128xf32, #tpu.memory_space<vmem>>, vector<8x128xf32>
    %46 = vector.shape_cast %45 : vector<8x128xf32> to vector<1x8x128xf32>
    %47 = arith.addf %44, %46 : vector<1x8x128xf32>
    %c0_19 = arith.constant 0 : index
    %c0_20 = arith.constant 0 : index
    %c0_21 = arith.constant 0 : index
    %48 = vector.load %arg6[%c0_19, %c0_20, %c0_21] : memref<1x8x128xf32, #tpu.memory_space<vmem>>, vector<1x8x128xf32>
    tpu.vector_store %arg6[%c0_19, %c0_20, %c0_21], %47 {strides = array<i32>} : memref<1x8x128xf32, #tpu.memory_space<vmem>>, vector<1x8x128xf32>,
    return
  }
  func.func @transform_0(%arg0: i32) -> (i32, i32, i32) {
    %c0_i32 = arith.constant 0 : i32
    %c0_i32_0 = arith.constant 0 : i32
    %c0_i32_1 = arith.constant 0 : i32
    return %arg0, %c0_i32, %c0_i32_0 : i32, i32, i32
  }
  func.func @transform_1(%arg0: i32) -> (i32, i32, i32) {
    %c0_i32 = arith.constant 0 : i32
    %c0_i32_0 = arith.constant 0 : i32
    %c0_i32_1 = arith.constant 0 : i32
    return %arg0, %c0_i32, %c0_i32_0 : i32, i32, i32
  }
  func.func @transform_2(%arg0: i32) -> (i32, i32, i32) {
    %c0_i32 = arith.constant 0 : i32
    %c0_i32_0 = arith.constant 0 : i32
    %c0_i32_1 = arith.constant 0 : i32
    %c0_i32_2 = arith.constant 0 : i32
    return %c0_i32, %c0_i32_0, %c0_i32_1 : i32, i32, i32
  }
  func.func @transform_3(%arg0: i32) -> (i32, i32) {
    %c0_i32 = arith.constant 0 : i32
    %c0_i32_0 = arith.constant 0 : i32
    %c0_i32_1 = arith.constant 0 : i32
    return %c0_i32, %c0_i32_0 : i32, i32
  }
  func.func @transform_4(%arg0: i32) -> (i32, i32) {
    %c0_i32 = arith.constant 0 : i32
    %c0_i32_0 = arith.constant 0 : i32
    %c0_i32_1 = arith.constant 0 : i32
    return %c0_i32, %c0_i32_0 : i32, i32
  }
  func.func @transform_5(%arg0: i32) -> (i32, i32, i32) {
    %c0_i32 = arith.constant 0 : i32
    %c0_i32_0 = arith.constant 0 : i32
    %c0_i32_1 = arith.constant 0 : i32
    return %arg0, %c0_i32, %c0_i32_0 : i32, i32, i32
  }
}

module attributes {stable_mosaic.version = 11 : i64} {
  func.func @data_embedding_kernel(%arg0: i32, %arg1: memref<1x8x4xf32, #tpu.memory_space<vmem>>, %arg2: memref<1x8x4xi32, #tpu.memory_space<vmem>>, %arg3: memref<3x4x128xf32, #tpu.memory_space<vmem>>, %arg4: memref<76x128xf32, #tpu.memory_space<vmem>>, %arg5: memref<8x128xf32, #tpu.memory_space<vmem>>, %arg6: memref<1x8x128xf32, #tpu.memory_space<vmem>>) attributes {dimension_semantics = [#tpu.dimension_semantics<parallel>], iteration_bounds = array<i64: 2>, scalar_prefetch = 0 : i64, scratch_operands = 0 : i64, tpu.core_type = #tpu.core_type<tc>, window_params = [{transform_indices = @transform_0, window_bounds = array<i64: 1, 8, 4>}, {transform_indices = @transform_1, window_bounds = array<i64: 1, 8, 4>}, {pipeline_mode = #tpu.pipeline_mode<synchronous>, transform_indices = @transform_2, window_bounds = array<i64: 3, 4, 128>}, {pipeline_mode = #tpu.pipeline_mode<synchronous>, transform_indices = @transform_3, window_bounds = array<i64: 76, 128>}, {pipeline_mode = #tpu.pipeline_mode<synchronous>, transform_indices = @transform_4, window_bounds = array<i64: 8, 128>}, {transform_indices = @transform_5, window_bounds = array<i64: 1, 8, 128>}]} {
    %c0 = arith.constant 0 : index
    %c0_0 = arith.constant 0 : index
    %c0_1 = arith.constant 0 : index
    %0 = vector.load %arg1[%c0, %c0_0, %c0_1] : memref<1x8x4xf32, #tpu.memory_space<vmem>>, vector<1x8x4xf32>
    %1 = vector.extract_strided_slice %0 {offsets = [0, 7, 0], sizes = [1, 1, 4], strides = [1, 1, 1]} : vector<1x8x4xf32> to vector<1x1x4xf32>
    %2 = vector.extract_strided_slice %0 {offsets = [0, 0, 0], sizes = [1, 7, 4], strides = [1, 1, 1]} : vector<1x8x4xf32> to vector<1x7x4xf32>
    %3 = tpu.concatenate %1, %2 in 1 : vector<1x1x4xf32>, vector<1x7x4xf32> -> vector<1x8x4xf32>
    %4 = vector.extract_strided_slice %0 {offsets = [0, 1, 0], sizes = [1, 7, 4], strides = [1, 1, 1]} : vector<1x8x4xf32> to vector<1x7x4xf32>
    %5 = vector.extract_strided_slice %0 {offsets = [0, 0, 0], sizes = [1, 1, 4], strides = [1, 1, 1]} : vector<1x8x4xf32> to vector<1x1x4xf32>
    %6 = tpu.concatenate %4, %5 in 1 : vector<1x7x4xf32>, vector<1x1x4xf32> -> vector<1x8x4xf32>
    %7 = vector.shape_cast %0 : vector<1x8x4xf32> to vector<8x4xf32>
    %8 = vector.shape_cast %3 : vector<1x8x4xf32> to vector<8x4xf32>
    %9 = vector.shape_cast %6 : vector<1x8x4xf32> to vector<8x4xf32>
    %c0_2 = arith.constant 0 : index
    %c0_3 = arith.constant 0 : index
    %c0_4 = arith.constant 0 : index
    %10 = vector.load %arg3[%c0_2, %c0_3, %c0_4] : memref<3x4x128xf32, #tpu.memory_space<vmem>>, vector<1x4x128xf32>
    %11 = vector.shape_cast %10 : vector<1x4x128xf32> to vector<4x128xf32>
    %cst = arith.constant dense<0.000000e+00> : vector<8x128xf32>
    %12 = tpu.matmul %8, %11, %cst {dimension_numbers = #tpu.dot_dimension_numbers<[1], [0], [0], [1], [0, 0, 1, 1], [], []>} : vector<8x4xf32>, vector<4x128xf32>, vector<8x128xf32> -> vector<8x128xf32>
    %c1 = arith.constant 1 : index
    %c0_5 = arith.constant 0 : index
    %c0_6 = arith.constant 0 : index
    %13 = vector.load %arg3[%c1, %c0_5, %c0_6] : memref<3x4x128xf32, #tpu.memory_space<vmem>>, vector<1x4x128xf32>
    %14 = vector.shape_cast %13 : vector<1x4x128xf32> to vector<4x128xf32>
    %cst_7 = arith.constant dense<0.000000e+00> : vector<8x128xf32>
    %15 = tpu.matmul %7, %14, %cst_7 {dimension_numbers = #tpu.dot_dimension_numbers<[1], [0], [0], [1], [0, 0, 1, 1], [], []>} : vector<8x4xf32>, vector<4x128xf32>, vector<8x128xf32> -> vector<8x128xf32>
    %16 = arith.addf %12, %15 : vector<8x128xf32>
    %c2 = arith.constant 2 : index
    %c0_8 = arith.constant 0 : index
    %c0_9 = arith.constant 0 : index
    %17 = vector.load %arg3[%c2, %c0_8, %c0_9] : memref<3x4x128xf32, #tpu.memory_space<vmem>>, vector<1x4x128xf32>
    %18 = vector.shape_cast %17 : vector<1x4x128xf32> to vector<4x128xf32>
    %cst_10 = arith.constant dense<0.000000e+00> : vector<8x128xf32>
    %19 = tpu.matmul %9, %18, %cst_10 {dimension_numbers = #tpu.dot_dimension_numbers<[1], [0], [0], [1], [0, 0, 1, 1], [], []>} : vector<8x4xf32>, vector<4x128xf32>, vector<8x128xf32> -> vector<8x128xf32>
    %20 = arith.addf %16, %19 : vector<8x128xf32>
    %c0_11 = arith.constant 0 : index
    %c0_12 = arith.constant 0 : index
    %c0_13 = arith.constant 0 : index
    %21 = vector.load %arg2[%c0_11, %c0_12, %c0_13] : memref<1x8x4xi32, #tpu.memory_space<vmem>>, vector<1x8x4xi32>
    %22 = vector.shape_cast %21 : vector<1x8x4xi32> to vector<8x4xi32>
    %23 = tpu.iota {dimensions = array<i32: 1>} : vector<8x76xi32>
    %24 = vector.extract_strided_slice %22 {offsets = [0, 0], sizes = [8, 1], strides = [1, 1]} : vector<8x4xi32> to vector<8x1xi32>
    %25 = vector.broadcast %24 : vector<8x1xi32> to vector<8x76xi32>
    %26 = arith.cmpi eq, %23, %25 : vector<8x76xi32>
    %27 = vector.extract_strided_slice %22 {offsets = [0, 1], sizes = [8, 1], strides = [1, 1]} : vector<8x4xi32> to vector<8x1xi32>
    %28 = vector.broadcast %27 : vector<8x1xi32> to vector<8x76xi32>
    %29 = arith.cmpi eq, %23, %28 : vector<8x76xi32>
    %30 = arith.ori %26, %29 : vector<8x76xi1>
    %31 = vector.extract_strided_slice %22 {offsets = [0, 2], sizes = [8, 1], strides = [1, 1]} : vector<8x4xi32> to vector<8x1xi32>
    %32 = vector.broadcast %31 : vector<8x1xi32> to vector<8x76xi32>
    %33 = arith.cmpi eq, %23, %32 : vector<8x76xi32>
    %34 = arith.ori %30, %33 : vector<8x76xi1>
    %35 = vector.extract_strided_slice %22 {offsets = [0, 3], sizes = [8, 1], strides = [1, 1]} : vector<8x4xi32> to vector<8x1xi32>
    %36 = vector.broadcast %35 : vector<8x1xi32> to vector<8x76xi32>
    %37 = arith.cmpi eq, %23, %36 : vector<8x76xi32>
    %38 = arith.ori %34, %37 : vector<8x76xi1>
    %39 = arith.extui %38 : vector<8x76xi1> to vector<8x76xi32>
    %40 = arith.sitofp %39 : vector<8x76xi32> to vector<8x76xf32>
    %c0_14 = arith.constant 0 : index
    %c0_15 = arith.constant 0 : index
    %41 = vector.load %arg4[%c0_14, %c0_15] : memref<76x128xf32, #tpu.memory_space<vmem>>, vector<76x128xf32>
    %cst_16 = arith.constant dense<0.000000e+00> : vector<8x128xf32>
    %42 = tpu.matmul %40, %41, %cst_16 {dimension_numbers = #tpu.dot_dimension_numbers<[1], [0], [0], [1], [0, 0, 1, 1], [], []>} : vector<8x76xf32>, vector<76x128xf32>, vector<8x128xf32> -> vector<8x128xf32>
    %43 = arith.addf %20, %42 : vector<8x128xf32>
    %44 = vector.shape_cast %43 : vector<8x128xf32> to vector<1x8x128xf32>
    %c0_17 = arith.constant 0 : index
    %c0_18 = arith.constant 0 : index
    %45 = vector.load %arg5[%c0_17, %c0_18] : memref<8x128xf32, #tpu.memory_space<vmem>>, vector<8x128xf32>
    %46 = vector.shape_cast %45 : vector<8x128xf32> to vector<1x8x128xf32>
    %47 = arith.addf %44, %46 : vector<1x8x128xf32>
    %c0_19 = arith.constant 0 : index
    %c0_20 = arith.constant 0 : index
    %c0_21 = arith.constant 0 : index
    %48 = vector.load %arg6[%c0_19, %c0_20, %c0_21] : memref<1x8x128xf32, #tpu.memory_space<vmem>>, vector<1x8x128xf32>
    tpu.vector_store %arg6[%c0_19, %c0_20, %c0_21], %47 {strides = array<i32>} : memref<1x8x128xf32, #tpu.memory_space<vmem>>, vector<1x8x128xf32>,
    return
  }
  func.func @transform_0(%arg0: i32) -> (i32, i32, i32) {
    %c0_i32 = arith.constant 0 : i32
    %c0_i32_0 = arith.constant 0 : i32
    %c0_i32_1 = arith.constant 0 : i32
    return %arg0, %c0_i32, %c0_i32_0 : i32, i32, i32
  }
  func.func @transform_1(%arg0: i32) -> (i32, i32, i32) {
    %c0_i32 = arith.constant 0 : i32
    %c0_i32_0 = arith.constant 0 : i32
    %c0_i32_1 = arith.constant 0 : i32
    return %arg0, %c0_i32, %c0_i32_0 : i32, i32, i32
  }
  func.func @transform_2(%arg0: i32) -> (i32, i32, i32) {
    %c0_i32 = arith.constant 0 : i32
    %c0_i32_0 = arith.constant 0 : i32
    %c0_i32_1 = arith.constant 0 : i32
    %c0_i32_2 = arith.constant 0 : i32
    return %c0_i32, %c0_i32_0, %c0_i32_1 : i32, i32, i32
  }
  func.func @transform_3(%arg0: i32) -> (i32, i32) {
    %c0_i32 = arith.constant 0 : i32
    %c0_i32_0 = arith.constant 0 : i32
    %c0_i32_1 = arith.constant 0 : i32
    return %c0_i32, %c0_i32_0 : i32, i32
  }
  func.func @transform_4(%arg0: i32) -> (i32, i32) {
    %c0_i32 = arith.constant 0 : i32
    %c0_i32_0 = arith.constant 0 : i32
    %c0_i32_1 = arith.constant 0 : i32
    return %c0_i32, %c0_i32_0 : i32, i32
  }
  func.func @transform_5(%arg0: i32) -> (i32, i32, i32) {
    %c0_i32 = arith.constant 0 : i32
    %c0_i32_0 = arith.constant 0 : i32
    %c0_i32_1 = arith.constant 0 : i32
    return %arg0, %c0_i32, %c0_i32_0 : i32, i32, i32
  }
}

</mosaic_0001>

<llo_original>
// kernel: tpu_custom_call.1
$region0: #{tpu_custom_call.1}
  #allocation0 [shape = 'u32[]', space=smem, size = 0x4, offset = 0x4, fixed_abs, tag = 'smem constant byte address 0x4 - core index']
  #allocation1 [shape = 'u32[144,128]{1,0:T(1,128)}', space=vmem, size = 0x12000, scoped, tag = 'internal scratch']
  %s0 = inlined_call_operand.vmem [shape: f32[2,8,4], index: 0, kind: input, shape index: {}]
  %s1 = inlined_call_operand.vmem [shape: s32[2,8,4], index: 1, kind: input, shape index: {}]
  %s2 = inlined_call_operand.vmem [shape: f32[3,4,128], index: 2, kind: input, shape index: {}]
  %s3 = inlined_call_operand.hbm [shape: f32[76,128], index: 3, kind: input, shape index: {}]
  %s4 = inlined_call_operand.vmem [shape: f32[8,128], index: 4, kind: input, shape index: {}]
  %s5 = inlined_call_operand.hbm [shape: f32[2,8,128], index: 5, kind: output, shape index: {}]
  %s6 = sld [smem:[#allocation0]]
  $region57: #{tpu_custom_call.1} parent=0
    _
  %s8 = ssub.s32 1, %s6
  %s9 = scalar_select 0, %s8, %s6
  $region1: #{tpu_custom_call.1} parent=0
    #allocation2 [shape = 'u8[40960]{0}', space=vmem, size = 0xa000, scoped, tag = 'input window, operand 3, single buffered']
    #allocation3 [shape = 's32[2]{0}', space=sflag, size = 0x8, scoped, tag = 'scoped memory for tpu_custom_call.1']
    #allocation4 [shape = 's32[2]{0}', space=sflag, size = 0x8, scoped, tag = 'scoped memory for tpu_custom_call.1']
    #allocation5 [shape = 'u8[8192]{0}', space=vmem, size = 0x2000, scoped, tag = 'output window, operand 0']
    %10 = vsyncpa [#allocation3], 0
    %11 = vsyncpa [#allocation4], 0
    %s12 = scalar_lea.sflag [#allocation4], 1
    %13 = vsyncpa %s12, 0
    loop: start=0, step=1, limit=4
    $region2: #{tpu_custom_call.1} parent=1 // loop_pre_header
      _
    $region3: #{tpu_custom_call.1} parent=1 // loop_header
      %s15 = sphi 0, %s19
      %p16 = scmp.ge.s32.totalorder %s15, 4
      %s25 = sphi 0, %s27
      %s28 = sphi 0, %s25
      %s29 = sphi 0, %s28
      %s45 = sphi 0, %s29
      %s51 = sphi 0, %s53
      %s54 = sphi 0, %s51
      %s55 = sphi 0, %s54
      %s71 = sphi 0, %s55
      %s75 = sphi 0, %s75
      %s77 = sphi 0, %s75
      %s78 = sphi 0, %s77
      %s92 = sphi 0, %s78
      %s96 = sphi 0, %s96
      %s98 = sphi 0, %s96
      %s99 = sphi 0, %s98
      %s113 = sphi 0, %s99
      %s117 = sphi 0, %s117
      %s119 = sphi 0, %s117
      %s120 = sphi 0, %s119
      %s134 = sphi 0, %s120
      %s140 = sphi 0, %s142
      %s143 = sphi 0, %s140
      %s144 = sphi 0, %s143
      %s160 = sphi 0, %s144
    $region4: #{tpu_custom_call.1} parent=1 // loop_header_branch
      %18 = sbr.rel (%p16) target = $region8
    $region5: #{tpu_custom_call.1} parent=1 // loop_body
      %s20 = ssub.s32 %s15, 1
      %s21 = ssub.s32 %s15, 2
      %s22 = sadd.s32 %s15, 1
      %s23 = ssub.s32 %s15, %s22
      %p24 = scmp.eq.s32.totalorder %s23, 0
      %s26 = sadd.s32 %s25, 1
      %s27 = scalar_select %p24, %s25, %s26
      %p30 = pneg %p24
      %p31 = scmp.eq.s32.totalorder %s15, 1
      %p32 = por %p30, %p31
      %p33 = scmp.ne.s32.totalorder %s25, %s28
      %p34 = scmp.eq.s32.totalorder %s15, 0
      %p35 = por %p33, %p34
      %p36 = scmp.ne.s32.totalorder %s25, %s28
      %p37 = scmp.eq.s32.totalorder %s20, 1
      %p38 = por %p36, %p37
      %p39 = scmp.ne.s32.totalorder %s28, %s29
      %p40 = scmp.eq.s32.totalorder %s20, 0
      %p41 = por %p39, %p40
      %p42 = scmp.ne.s32.totalorder %s28, %s29
      %p43 = scmp.eq.s32.totalorder %s21, 1
      %p44 = por %p42, %p43
      %p46 = scmp.ne.s32.totalorder %s29, %s45
      %p47 = scmp.eq.s32.totalorder %s21, 0
      %p48 = por %p46, %p47
      %s49 = ssub.s32 %s15, %s22
      %p50 = scmp.eq.s32.totalorder %s49, 0
      %s52 = sadd.s32 %s51, 1
      %s53 = scalar_select %p50, %s51, %s52
      %p56 = pneg %p50
      %p57 = scmp.eq.s32.totalorder %s15, 1
      %p58 = por %p56, %p57
      %p59 = scmp.ne.s32.totalorder %s51, %s54
      %p60 = scmp.eq.s32.totalorder %s15, 0
      %p61 = por %p59, %p60
      %p62 = scmp.ne.s32.totalorder %s51, %s54
      %p63 = scmp.eq.s32.totalorder %s20, 1
      %p64 = por %p62, %p63
      %p65 = scmp.ne.s32.totalorder %s54, %s55
      %p66 = scmp.eq.s32.totalorder %s20, 0
      %p67 = por %p65, %p66
      %p68 = scmp.ne.s32.totalorder %s54, %s55
      %p69 = scmp.eq.s32.totalorder %s21, 1
      %p70 = por %p68, %p69
      %p72 = scmp.ne.s32.totalorder %s55, %s71
      %p73 = scmp.eq.s32.totalorder %s21, 0
      %p74 = por %p72, %p73
      %s76 = sadd.s32 %s75, 1
      %p79 = scmp.eq.s32.totalorder %s15, 1
      %p80 = scmp.ne.s32.totalorder %s75, %s77
      %p81 = scmp.eq.s32.totalorder %s15, 0
      %p82 = por %p80, %p81
      %p83 = scmp.ne.s32.totalorder %s75, %s77
      %p84 = scmp.eq.s32.totalorder %s20, 1
      %p85 = por %p83, %p84
      %p86 = scmp.ne.s32.totalorder %s77, %s78
      %p87 = scmp.eq.s32.totalorder %s20, 0
      %p88 = por %p86, %p87
      %p89 = scmp.ne.s32.totalorder %s77, %s78
      %p90 = scmp.eq.s32.totalorder %s21, 1
      %p91 = por %p89, %p90
      %p93 = scmp.ne.s32.totalorder %s78, %s92
      %p94 = scmp.eq.s32.totalorder %s21, 0
      %p95 = por %p93, %p94
      %s97 = sadd.s32 %s96, 1
      %p100 = scmp.eq.s32.totalorder %s15, 1
      %p101 = scmp.ne.s32.totalorder %s96, %s98
      %p102 = scmp.eq.s32.totalorder %s15, 0
      %p103 = por %p101, %p102
      %p104 = scmp.ne.s32.totalorder %s96, %s98
      %p105 = scmp.eq.s32.totalorder %s20, 1
      %p106 = por %p104, %p105
      %p107 = scmp.ne.s32.totalorder %s98, %s99
      %p108 = scmp.eq.s32.totalorder %s20, 0
      %p109 = por %p107, %p108
      %p110 = scmp.ne.s32.totalorder %s98, %s99
      %p111 = scmp.eq.s32.totalorder %s21, 1
      %p112 = por %p110, %p111
      %p114 = scmp.ne.s32.totalorder %s99, %s113
      %p115 = scmp.eq.s32.totalorder %s21, 0
      %p116 = por %p114, %p115
      %s118 = sadd.s32 %s117, 1
      %p121 = scmp.eq.s32.totalorder %s15, 1
      %p122 = scmp.ne.s32.totalorder %s117, %s119
      %p123 = scmp.eq.s32.totalorder %s15, 0
      %p124 = por %p122, %p123
      %p125 = scmp.ne.s32.totalorder %s117, %s119
      %p126 = scmp.eq.s32.totalorder %s20, 1
      %p127 = por %p125, %p126
      %p128 = scmp.ne.s32.totalorder %s119, %s120
      %p129 = scmp.eq.s32.totalorder %s20, 0
      %p130 = por %p128, %p129
      %p131 = scmp.ne.s32.totalorder %s119, %s120
      %p132 = scmp.eq.s32.totalorder %s21, 1
      %p133 = por %p131, %p132
      %p135 = scmp.ne.s32.totalorder %s120, %s134
      %p136 = scmp.eq.s32.totalorder %s21, 0
      %p137 = por %p135, %p136
      %s138 = ssub.s32 %s15, %s22
      %p139 = scmp.eq.s32.totalorder %s138, 0
      %s141 = sadd.s32 %s140, 1
      %s142 = scalar_select %p139, %s140, %s141
      %p145 = pneg %p139
      %p146 = scmp.eq.s32.totalorder %s15, 1
      %p147 = por %p145, %p146
      %p148 = scmp.ne.s32.totalorder %s140, %s143
      %p149 = scmp.eq.s32.totalorder %s15, 0
      %p150 = por %p148, %p149
      %p151 = scmp.ne.s32.totalorder %s140, %s143
      %p152 = scmp.eq.s32.totalorder %s20, 1
      %p153 = por %p151, %p152
      %p154 = scmp.ne.s32.totalorder %s143, %s144
      %p155 = scmp.eq.s32.totalorder %s20, 0
      %p156 = por %p154, %p155
      %p157 = scmp.ne.s32.totalorder %s143, %s144
      %p158 = scmp.eq.s32.totalorder %s21, 1
      %p159 = por %p157, %p158
      %p161 = scmp.ne.s32.totalorder %s144, %s160
      %p162 = scmp.eq.s32.totalorder %s21, 0
      %p163 = por %p161, %p162
      %p164 = scmp.le.s32.totalorder 1, %s15
      %p165 = scmp.lt.s32.totalorder %s15, 3
      %p166 = pnand %p164, %p165
      %p167 = pneg %p166
      // Predicated region
      $region9: #{tpu_custom_call.1} parent=5 // pred_check
        _
      $region10: #{tpu_custom_call.1} parent=5 // pred_check_branch
        %169 = sbr.rel (%p166) target = $region12
      $region11: #{tpu_custom_call.1} parent=5 // pred_region
        %s170 = ssub.s32 %s15, 1
        // Predicated region
        $region13: #{tpu_custom_call.1} parent=11 // pred_check
          %p171 = pneg %p88
        $region14: #{tpu_custom_call.1} parent=11 // pred_check_branch
          %173 = sbr.rel (%p171) target = $region16
        $region15: #{tpu_custom_call.1} parent=11 // pred_region
          _
        $region16: #{tpu_custom_call.1} parent=11 // pred_fallthru
          _
        // Predicated region
        $region17: #{tpu_custom_call.1} parent=11 // pred_check
          %p174 = pneg %p109
        $region18: #{tpu_custom_call.1} parent=11 // pred_check_branch
          %176 = sbr.rel (%p174) target = $region20
        $region19: #{tpu_custom_call.1} parent=11 // pred_region
          %s178 = ssub.s32 1280, 1280
          %179 = vsyncadd [#allocation3], %s178
          %s180 = sshll.u32 [#allocation2], 4
          %s181 = int_to_ptr.vmem [resolvable:$true] %s180
          %186 = dma.hbm_to_vmem [thread:$0]  %s3, 1280, %s181, [#allocation3], 128, 128, 8
        $region20: #{tpu_custom_call.1} parent=11 // pred_fallthru
          _
        // Predicated region
        $region21: #{tpu_custom_call.1} parent=11 // pred_check
          %p187 = pneg %p130
        $region22: #{tpu_custom_call.1} parent=11 // pred_check_branch
          %189 = sbr.rel (%p187) target = $region24
        $region23: #{tpu_custom_call.1} parent=11 // pred_region
          _
        $region24: #{tpu_custom_call.1} parent=11 // pred_fallthru
          _
      $region12: #{tpu_custom_call.1} parent=5 // pred_fallthru
        _
      %p190 = scmp.lt.s32.totalorder %s15, 2
      // Predicated region
      $region25: #{tpu_custom_call.1} parent=5 // pred_check
        %p191 = pneg %p190
      $region26: #{tpu_custom_call.1} parent=5 // pred_check_branch
        %193 = sbr.rel (%p191) target = $region28
      $region27: #{tpu_custom_call.1} parent=5 // pred_region
        // Predicated region
        $region29: #{tpu_custom_call.1} parent=27 // pred_check
          %p194 = pneg %p35
        $region30: #{tpu_custom_call.1} parent=27 // pred_check_branch
          %196 = sbr.rel (%p194) target = $region32
        $region31: #{tpu_custom_call.1} parent=27 // pred_region
          %p197 = scmp.lt.s32.totalorder %s15, 1
          %s198 = scalar_select %p197, %s15, 1
          %s199 = smul.addr %s198, 8
          %s200 = scalar_lea.vmem %s0, %s199
        $region32: #{tpu_custom_call.1} parent=27 // pred_fallthru
          _
        // Predicated region
        $region33: #{tpu_custom_call.1} parent=27 // pred_check
          %p201 = pneg %p61
        $region34: #{tpu_custom_call.1} parent=27 // pred_check_branch
          %203 = sbr.rel (%p201) target = $region36
        $region35: #{tpu_custom_call.1} parent=27 // pred_region
          %p204 = scmp.lt.s32.totalorder %s15, 1
          %s205 = scalar_select %p204, %s15, 1
          %s206 = smul.addr %s205, 8
          %s207 = scalar_lea.vmem %s1, %s206
        $region36: #{tpu_custom_call.1} parent=27 // pred_fallthru
          _
      $region28: #{tpu_custom_call.1} parent=5 // pred_fallthru
        _
      %p208 = scmp.le.s32.totalorder 1, %s15
      %p209 = scmp.lt.s32.totalorder %s15, 3
      %p210 = pnand %p208, %p209
      %p211 = pneg %p210
      // Predicated region
      $region37: #{tpu_custom_call.1} parent=5 // pred_check
        _
      $region38: #{tpu_custom_call.1} parent=5 // pred_check_branch
        %213 = sbr.rel (%p210) target = $region40
      $region39: #{tpu_custom_call.1} parent=5 // pred_region
        %s214 = ssub.s32 %s15, 1
        // Predicated region
        $region41: #{tpu_custom_call.1} parent=39 // pred_check
          %p215 = pneg %p109
        $region42: #{tpu_custom_call.1} parent=39 // pred_check_branch
          %217 = sbr.rel (%p215) target = $region44
        $region43: #{tpu_custom_call.1} parent=39 // pred_region
          %218 = dma.done [#allocation3], 1280
        $region44: #{tpu_custom_call.1} parent=39 // pred_fallthru
          _
        %p219 = scmp.lt.s32.totalorder %s20, 1
        %s220 = scalar_select %p219, %s20, 1
        %s221 = smul.addr %s220, 8
        %s222 = scalar_lea.vmem %s0, %s221
        %p223 = pneg %p41
        %p224 = pneg %p38
        %p225 = scmp.lt.s32.totalorder %s20, 1
        %s226 = scalar_select %p225, %s20, 1
        %s227 = smul.addr %s226, 8
        %s228 = scalar_lea.vmem %s1, %s227
        %p229 = pneg %p67
        %p230 = pneg %p64
        %p231 = pneg %p88
        %p232 = pneg %p85
        %p233 = pneg %p109
        %p234 = pneg %p106
        %p235 = pneg %p130
        %p236 = pneg %p127
        %p237 = pneg %p156
        %p238 = pneg %p153
        %s239 = sand.u32 %s143, 1
        %s240 = scalar_lea.sflag [#allocation4], %s239
        %s241 = sand.u32 %s143, 1
        %s242 = smul.addr %s241, 8
        %s243 = scalar_lea.vmem [#allocation5], %s242
        %p244 = scmp.lt.s32.totalorder %s20, 1
        %s245 = scalar_select %p244, %s20, 1
        %s246 = smul.addr %s245, 8
        %s247 = scalar_lea.vmem %s0, %s246
        %p248 = scmp.lt.s32.totalorder %s20, 1
        %s249 = scalar_select %p248, %s20, 1
        %s250 = smul.addr %s249, 8
        %s251 = scalar_lea.vmem %s1, %s250
        %v252 = vld [vmem:[%s247] sm:$0xff]
        %v254 = vrot.slane %v252, 7
        %vm256 = vcmask 1040384
        %v257 = vsel %vm256, %v254, %v254
        %v258 = vrot.slane %v252, 1
        %vm260 = vcmask 1046528
        %v261 = vsel %vm260, %v258, %v258
        %v262 = vld [vmem:[%s2] sm:$0xf]
        %s263 = scalar_lea.vmem %s2, 4
        %v264 = vld [vmem:[%s263] sm:$0xf]
        %vm265 = vcmask 31744
        %v266 = vsel %vm265, %v252, 0
        %vm268 = vcmask 1043456
        %v270 = vsel %vm268, %v264, 0
        %272 = vmatprep.subr.mxu0 0.0
        %273 = vmatpush1.msra.mxu0 0.0
        %274 = vmatprep.subr.mxu0 0.0
        %275 = vmatpush1.msra.mxu0 0.0
        %276 = vmatprep.subr.mxu0 0.0
        %277 = vmatpush1.msra.mxu0 0.0
        %278 = vmatprep.subr.mxu0 0.0
        %279 = vmatpush1.msra.mxu0 0.0
        %280 = vmatprep.subr.mxu0 0.0
        %281 = vmatpush1.msra.mxu0 0.0
        %282 = vmatprep.subr.mxu0 0.0
        %283 = vmatpush1.msra.mxu0 0.0
        %284 = vmatprep.subr.mxu0 0.0
        %285 = vmatpush1.msra.mxu0 0.0
        %286 = vmatprep.subr.mxu0 0.0
        %287 = vmatpush1.msra.mxu0 0.0
        %288 = vmatprep.subr.mxu0 0.0
        %289 = vmatpush1.msra.mxu0 0.0
        %290 = vmatprep.subr.mxu0 0.0
        %291 = vmatpush1.msra.mxu0 0.0
        %292 = vmatprep.subr.mxu0 0.0
        %293 = vmatpush1.msra.mxu0 0.0
        %294 = vmatprep.subr.mxu0 0.0
        %295 = vmatpush1.msra.mxu0 0.0
        %296 = vmatprep.subr.mxu0 0.0
        %297 = vmatpush1.msra.mxu0 0.0
        %298 = vmatprep.subr.mxu0 0.0
        %299 = vmatpush1.msra.mxu0 0.0
        %300 = vmatprep.subr.mxu0 0.0
        %301 = vmatpush1.msra.mxu0 0.0
        %302 = vmatprep.subr.mxu0 0.0
        %303 = vmatpush1.msra.mxu0 %v270
        %304 = vmatprep.subr.mxu0 0.0
        %305 = vmatpush2.msra.mxu0 0.0
        %306 = vmatprep.subr.mxu0 0.0
        %307 = vmatpush2.msra.mxu0 0.0
        %308 = vmatprep.subr.mxu0 0.0
        %309 = vmatpush2.msra.mxu0 0.0
        %310 = vmatprep.subr.mxu0 0.0
        %311 = vmatpush2.msra.mxu0 0.0
        %312 = vmatprep.subr.mxu0 0.0
        %313 = vmatpush2.msra.mxu0 0.0
        %314 = vmatprep.subr.mxu0 0.0
        %315 = vmatpush2.msra.mxu0 0.0
        %316 = vmatprep.subr.mxu0 0.0
        %317 = vmatpush2.msra.mxu0 0.0
        %318 = vmatprep.subr.mxu0 0.0
        %319 = vmatpush2.msra.mxu0 0.0
        %320 = vmatprep.subr.mxu0 0.0
        %321 = vmatpush2.msra.mxu0 0.0
        %322 = vmatprep.subr.mxu0 0.0
        %323 = vmatpush2.msra.mxu0 0.0
        %324 = vmatprep.subr.mxu0 0.0
        %325 = vmatpush2.msra.mxu0 0.0
        %326 = vmatprep.subr.mxu0 0.0
        %327 = vmatpush2.msra.mxu0 0.0
        %328 = vmatprep.subr.mxu0 0.0
        %329 = vmatpush2.msra.mxu0 0.0
        %330 = vmatprep.subr.mxu0 0.0
        %331 = vmatpush2.msra.mxu0 0.0
        %332 = vmatprep.subr.mxu0 0.0
        %333 = vmatpush2.msra.mxu0 0.0
        %334 = vmatprep.subr.mxu0 0.0
        %335 = vmatpush2.msra.mxu0 0.0
        %336 = vmatprep.mubr.f32.mxu0 0.0
        %337 = vmatmul.mubr.f32.gmra.mxu0 %v266
        %v338 = vpop.f32.mrf.mxu0
        %v339 = vadd.f32 0.0, %v338
        %v340 = vpop.f32.mrf.mxu0
        %341 = vdwg.mxu0
        %v343 = vsel %vm265, %v257, 0
        %v346 = vsel %vm268, %v262, 0
        %348 = vmatprep.subr.mxu0 0.0
        %349 = vmatpush1.msra.mxu0 0.0
        %350 = vmatprep.subr.mxu0 0.0
        %351 = vmatpush1.msra.mxu0 0.0
        %352 = vmatprep.subr.mxu0 0.0
        %353 = vmatpush1.msra.mxu0 0.0
        %354 = vmatprep.subr.mxu0 0.0
        %355 = vmatpush1.msra.mxu0 0.0
        %356 = vmatprep.subr.mxu0 0.0
        %357 = vmatpush1.msra.mxu0 0.0
        %358 = vmatprep.subr.mxu0 0.0
        %359 = vmatpush1.msra.mxu0 0.0
        %360 = vmatprep.subr.mxu0 0.0
        %361 = vmatpush1.msra.mxu0 0.0
        %362 = vmatprep.subr.mxu0 0.0
        %363 = vmatpush1.msra.mxu0 0.0
        %364 = vmatprep.subr.mxu0 0.0
        %365 = vmatpush1.msra.mxu0 0.0
        %366 = vmatprep.subr.mxu0 0.0
        %367 = vmatpush1.msra.mxu0 0.0
        %368 = vmatprep.subr.mxu0 0.0
        %369 = vmatpush1.msra.mxu0 0.0
        %370 = vmatprep.subr.mxu0 0.0
        %371 = vmatpush1.msra.mxu0 0.0
        %372 = vmatprep.subr.mxu0 0.0
        %373 = vmatpush1.msra.mxu0 0.0
        %374 = vmatprep.subr.mxu0 0.0
        %375 = vmatpush1.msra.mxu0 0.0
        %376 = vmatprep.subr.mxu0 0.0
        %377 = vmatpush1.msra.mxu0 0.0
        %378 = vmatprep.subr.mxu0 0.0
        %379 = vmatpush1.msra.mxu0 %v346
        %380 = vmatprep.subr.mxu0 0.0
        %381 = vmatpush2.msra.mxu0 0.0
        %382 = vmatprep.subr.mxu0 0.0
        %383 = vmatpush2.msra.mxu0 0.0
        %384 = vmatprep.subr.mxu0 0.0
        %385 = vmatpush2.msra.mxu0 0.0
        %386 = vmatprep.subr.mxu0 0.0
        %387 = vmatpush2.msra.mxu0 0.0
        %388 = vmatprep.subr.mxu0 0.0
        %389 = vmatpush2.msra.mxu0 0.0
        %390 = vmatprep.subr.mxu0 0.0
        %391 = vmatpush2.msra.mxu0 0.0
        %392 = vmatprep.subr.mxu0 0.0
        %393 = vmatpush2.msra.mxu0 0.0
        %394 = vmatprep.subr.mxu0 0.0
        %395 = vmatpush2.msra.mxu0 0.0
        %396 = vmatprep.subr.mxu0 0.0
        %397 = vmatpush2.msra.mxu0 0.0
        %398 = vmatprep.subr.mxu0 0.0
        %399 = vmatpush2.msra.mxu0 0.0
        %400 = vmatprep.subr.mxu0 0.0
        %401 = vmatpush2.msra.mxu0 0.0
        %402 = vmatprep.subr.mxu0 0.0
        %403 = vmatpush2.msra.mxu0 0.0
        %404 = vmatprep.subr.mxu0 0.0
        %405 = vmatpush2.msra.mxu0 0.0
        %406 = vmatprep.subr.mxu0 0.0
        %407 = vmatpush2.msra.mxu0 0.0
        %408 = vmatprep.subr.mxu0 0.0
        %409 = vmatpush2.msra.mxu0 0.0
        %410 = vmatprep.subr.mxu0 0.0
        %411 = vmatpush2.msra.mxu0 0.0
        %412 = vmatprep.mubr.f32.mxu0 0.0
        %413 = vmatmul.mubr.f32.gmra.mxu0 %v343
        %v414 = vpop.f32.mrf.mxu0
        %v415 = vadd.f32 %v339, %v414
        %v416 = vpop.f32.mrf.mxu0
        %417 = vdwg.mxu0
        %s418 = scalar_lea.vmem %s2, 8
        %v419 = vld [vmem:[%s418] sm:$0xf]
        %v421 = vsel %vm265, %v261, 0
        %v424 = vsel %vm268, %v419, 0
        %426 = vmatprep.subr.mxu0 0.0
        %427 = vmatpush1.msra.mxu0 0.0
        %428 = vmatprep.subr.mxu0 0.0
        %429 = vmatpush1.msra.mxu0 0.0
        %430 = vmatprep.subr.mxu0 0.0
        %431 = vmatpush1.msra.mxu0 0.0
        %432 = vmatprep.subr.mxu0 0.0
        %433 = vmatpush1.msra.mxu0 0.0
        %434 = vmatprep.subr.mxu0 0.0
        %435 = vmatpush1.msra.mxu0 0.0
        %436 = vmatprep.subr.mxu0 0.0
        %437 = vmatpush1.msra.mxu0 0.0
        %438 = vmatprep.subr.mxu0 0.0
        %439 = vmatpush1.msra.mxu0 0.0
        %440 = vmatprep.subr.mxu0 0.0
        %441 = vmatpush1.msra.mxu0 0.0
        %442 = vmatprep.subr.mxu0 0.0
        %443 = vmatpush1.msra.mxu0 0.0
        %444 = vmatprep.subr.mxu0 0.0
        %445 = vmatpush1.msra.mxu0 0.0
        %446 = vmatprep.subr.mxu0 0.0
        %447 = vmatpush1.msra.mxu0 0.0
        %448 = vmatprep.subr.mxu0 0.0
        %449 = vmatpush1.msra.mxu0 0.0
        %450 = vmatprep.subr.mxu0 0.0
        %451 = vmatpush1.msra.mxu0 0.0
        %452 = vmatprep.subr.mxu0 0.0
        %453 = vmatpush1.msra.mxu0 0.0
        %454 = vmatprep.subr.mxu0 0.0
        %455 = vmatpush1.msra.mxu0 0.0
        %456 = vmatprep.subr.mxu0 0.0
        %457 = vmatpush1.msra.mxu0 %v424
        %458 = vmatprep.subr.mxu0 0.0
        %459 = vmatpush2.msra.mxu0 0.0
        %460 = vmatprep.subr.mxu0 0.0
        %461 = vmatpush2.msra.mxu0 0.0
        %462 = vmatprep.subr.mxu0 0.0
        %463 = vmatpush2.msra.mxu0 0.0
        %464 = vmatprep.subr.mxu0 0.0
        %465 = vmatpush2.msra.mxu0 0.0
        %466 = vmatprep.subr.mxu0 0.0
        %467 = vmatpush2.msra.mxu0 0.0
        %468 = vmatprep.subr.mxu0 0.0
        %469 = vmatpush2.msra.mxu0 0.0
        %470 = vmatprep.subr.mxu0 0.0
        %471 = vmatpush2.msra.mxu0 0.0
        %472 = vmatprep.subr.mxu0 0.0
        %473 = vmatpush2.msra.mxu0 0.0
        %474 = vmatprep.subr.mxu0 0.0
        %475 = vmatpush2.msra.mxu0 0.0
        %476 = vmatprep.subr.mxu0 0.0
        %477 = vmatpush2.msra.mxu0 0.0
        %478 = vmatprep.subr.mxu0 0.0
        %479 = vmatpush2.msra.mxu0 0.0
        %480 = vmatprep.subr.mxu0 0.0
        %481 = vmatpush2.msra.mxu0 0.0
        %482 = vmatprep.subr.mxu0 0.0
        %483 = vmatpush2.msra.mxu0 0.0
        %484 = vmatprep.subr.mxu0 0.0
        %485 = vmatpush2.msra.mxu0 0.0
        %486 = vmatprep.subr.mxu0 0.0
        %487 = vmatpush2.msra.mxu0 0.0
        %488 = vmatprep.subr.mxu0 0.0
        %489 = vmatpush2.msra.mxu0 0.0
        %490 = vmatprep.mubr.f32.mxu0 0.0
        %491 = vmatmul.mubr.f32.gmra.mxu0 %v421
        %v492 = vpop.f32.mrf.mxu0
        %v493 = vadd.f32 0.0, %v492
        %v494 = vpop.f32.mrf.mxu0
        %495 = vdwg.mxu0
        %v496 = vadd.f32 %v415, %v493
        %v497 = vld [vmem:[%s251] sm:$0xff]
        %v498 = vlaneseq
        %v499 = vand.u32 %v498, 127
        %500 = vset.pattern.permute.xlu0 0
        %501 = vperm.xlu0 %500, %v497
        %v502 = vpop.permute.xlu0 %501
        %vm503 = vcmp.eq.s32.totalorder %v499, %v502
        %504 = vset.pattern.permute.xlu0 1
        %505 = vperm.xlu0 %504, %v497
        %v506 = vpop.permute.xlu0 %505
        %vm507 = vcmp.eq.s32.totalorder %v499, %v506
        %vm508 = vmor %vm503, %vm507
        %509 = vset.pattern.permute.xlu0 2
        %510 = vperm.xlu0 %509, %v497
        %v511 = vpop.permute.xlu0 %510
        %vm512 = vcmp.eq.s32.totalorder %v499, %v511
        %vm513 = vmor %vm508, %vm512
        %514 = vset.pattern.permute.xlu0 3
        %515 = vperm.xlu0 %514, %v497
        %v516 = vpop.permute.xlu0 %515
        %vm517 = vcmp.eq.s32.totalorder %v499, %v516
        %vm518 = vmor %vm513, %vm517
        %v519 = vsel %vm518, 1, 0
        %v520 = vcvt.s32.f32 %v519
        %v521 = vld [vmem:[#allocation2] sm:$0xff]
        %v522 = vld [vmem:[#allocation2 + $0x8] sm:$0xff]
        %v523 = vld [vmem:[#allocation2 + $0x10] sm:$0xff]
        %v524 = vld [vmem:[#allocation2 + $0x18] sm:$0xff]
        %v525 = vld [vmem:[#allocation2 + $0x20] sm:$0xff]
        %v526 = vld [vmem:[#allocation2 + $0x28] sm:$0xff]
        %v527 = vld [vmem:[#allocation2 + $0x30] sm:$0xff]
        %v528 = vld [vmem:[#allocation2 + $0x38] sm:$0xff]
        %v529 = vld [vmem:[#allocation2 + $0x40] sm:$0xff]
        %v530 = vld [vmem:[#allocation2 + $0x48] sm:$0xf]
        %vm531 = vcmask 621568
        %v533 = vsel %vm531, %v520, 0
        %v536 = vsel %vm268, %v530, 0
        %538 = vmatprep.subr.mxu0 0.0
        %539 = vmatpush1.msra.mxu0 0.0
        %540 = vmatprep.subr.mxu0 0.0
        %541 = vmatpush1.msra.mxu0 0.0
        %542 = vmatprep.subr.mxu0 0.0
        %543 = vmatpush1.msra.mxu0 0.0
        %544 = vmatprep.subr.mxu0 0.0
        %545 = vmatpush1.msra.mxu0 0.0
        %546 = vmatprep.subr.mxu0 0.0
        %547 = vmatpush1.msra.mxu0 0.0
        %548 = vmatprep.subr.mxu0 0.0
        %549 = vmatpush1.msra.mxu0 0.0
        %550 = vmatprep.subr.mxu0 0.0
        %551 = vmatpush1.msra.mxu0 %v536
        %552 = vmatprep.subr.mxu0 0.0
        %553 = vmatpush1.msra.mxu0 %v529
        %554 = vmatprep.subr.mxu0 0.0
        %555 = vmatpush1.msra.mxu0 %v528
        %556 = vmatprep.subr.mxu0 0.0
        %557 = vmatpush1.msra.mxu0 %v527
        %558 = vmatprep.subr.mxu0 0.0
        %559 = vmatpush1.msra.mxu0 %v526
        %560 = vmatprep.subr.mxu0 0.0
        %561 = vmatpush1.msra.mxu0 %v525
        %562 = vmatprep.subr.mxu0 0.0
        %563 = vmatpush1.msra.mxu0 %v524
        %564 = vmatprep.subr.mxu0 0.0
        %565 = vmatpush1.msra.mxu0 %v523
        %566 = vmatprep.subr.mxu0 0.0
        %567 = vmatpush1.msra.mxu0 %v522
        %568 = vmatprep.subr.mxu0 0.0
        %569 = vmatpush1.msra.mxu0 %v521
        %570 = vmatprep.subr.mxu0 0.0
        %571 = vmatpush2.msra.mxu0 0.0
        %572 = vmatprep.subr.mxu0 0.0
        %573 = vmatpush2.msra.mxu0 0.0
        %574 = vmatprep.subr.mxu0 0.0
        %575 = vmatpush2.msra.mxu0 0.0
        %576 = vmatprep.subr.mxu0 0.0
        %577 = vmatpush2.msra.mxu0 0.0
        %578 = vmatprep.subr.mxu0 0.0
        %579 = vmatpush2.msra.mxu0 0.0
        %580 = vmatprep.subr.mxu0 0.0
        %581 = vmatpush2.msra.mxu0 0.0
        %582 = vmatprep.subr.mxu0 0.0
        %583 = vmatpush2.msra.mxu0 0.0
        %584 = vmatprep.subr.mxu0 0.0
        %585 = vmatpush2.msra.mxu0 0.0
        %586 = vmatprep.subr.mxu0 0.0
        %587 = vmatpush2.msra.mxu0 0.0
        %588 = vmatprep.subr.mxu0 0.0
        %589 = vmatpush2.msra.mxu0 0.0
        %590 = vmatprep.subr.mxu0 0.0
        %591 = vmatpush2.msra.mxu0 0.0
        %592 = vmatprep.subr.mxu0 0.0
        %593 = vmatpush2.msra.mxu0 0.0
        %594 = vmatprep.subr.mxu0 0.0
        %595 = vmatpush2.msra.mxu0 0.0
        %596 = vmatprep.subr.mxu0 0.0
        %597 = vmatpush2.msra.mxu0 0.0
        %598 = vmatprep.subr.mxu0 0.0
        %599 = vmatpush2.msra.mxu0 0.0
        %600 = vmatprep.subr.mxu0 0.0
        %601 = vmatpush2.msra.mxu0 0.0
        %602 = vmatprep.mubr.f32.mxu0 0.0
        %603 = vmatmul.mubr.f32.gmra.mxu0 %v533
        %v604 = vpop.f32.mrf.mxu0
        %v605 = vadd.f32 0.0, %v604
        %v606 = vpop.f32.mrf.mxu0
        %607 = vdwg.mxu0
        %v608 = vadd.f32 %v496, %v605
        %v609 = vld [vmem:[%s4] sm:$0xff]
        %v610 = vadd.f32 %v608, %v609
        %611 = vst [vmem:[%s243] sm:$0xff] %v610
        %s612 = sand.u32 %s143, 1
        %s613 = scalar_lea.sflag [#allocation4], %s612
        %s614 = sand.u32 %s143, 1
        %s615 = smul.addr %s614, 8
        %s616 = scalar_lea.vmem [#allocation5], %s615
        // Predicated region
        $region45: #{tpu_custom_call.1} parent=39 // pred_check
          %p617 = pneg %p153
        $region46: #{tpu_custom_call.1} parent=39 // pred_check_branch
          %619 = sbr.rel (%p617) target = $region48
        $region47: #{tpu_custom_call.1} parent=39 // pred_region
          %s621 = ssub.s32 128, 128
          %622 = vsyncadd %s613, %s621
          %s623 = smul.addr %s20, 128
          %s624 = scalar_lea.hbm %s5, %s623
          %s626 = sshll.u32 %s616, 4
          %s627 = int_to_ptr.vmem [resolvable:$true] %s626
          %629 = dma.vmem_to_hbm [thread:$0]  %s627, 128, %s624, %s613
        $region48: #{tpu_custom_call.1} parent=39 // pred_fallthru
          _
      $region40: #{tpu_custom_call.1} parent=5 // pred_fallthru
        _
      %p630 = scmp.le.s32.totalorder 2, %s15
      // Predicated region
      $region49: #{tpu_custom_call.1} parent=5 // pred_check
        %p631 = pneg %p630
      $region50: #{tpu_custom_call.1} parent=5 // pred_check_branch
        %633 = sbr.rel (%p631) target = $region52
      $region51: #{tpu_custom_call.1} parent=5 // pred_region
        %s634 = ssub.s32 %s15, 2
        // Predicated region
        $region53: #{tpu_custom_call.1} parent=51 // pred_check
          %p635 = pneg %p159
        $region54: #{tpu_custom_call.1} parent=51 // pred_check_branch
          %637 = sbr.rel (%p635) target = $region56
        $region55: #{tpu_custom_call.1} parent=51 // pred_region
          %s638 = sand.u32 %s144, 1
          %s639 = scalar_lea.sflag [#allocation4], %s638
          %s640 = sand.u32 %s144, 1
          %s641 = smul.addr %s640, 8
          %s642 = scalar_lea.vmem [#allocation5], %s641
          %643 = dma.done %s639, 128
        $region56: #{tpu_custom_call.1} parent=51 // pred_fallthru
          _
      $region52: #{tpu_custom_call.1} parent=5 // pred_fallthru
        _
    $region6: #{tpu_custom_call.1} parent=1 // loop_footer
      %s19 = sadd.s32 1, %s15
    $region7: #{tpu_custom_call.1} parent=1 // loop_footer_branch
      %14 = sbr.rel target = $region3
    $region8: #{tpu_custom_call.1} parent=1 // loop_exit
      _
    %644 = vsyncpa [#allocation3], 1
    %s645 = scalar_lea.sflag [#allocation3], 1
    %646 = vsyncpa %s645, 1
    %647 = vsyncpa [#allocation4], 1
    %s648 = scalar_lea.sflag [#allocation4], 1
    %649 = vsyncpa %s648, 1

// kernel: tpu_custom_call.1
$region0: #{tpu_custom_call.1}
  #allocation0 [shape = 'u32[]', space=smem, size = 0x4, offset = 0x4, fixed_abs, tag = 'smem constant byte address 0x4 - core index']
  #allocation1 [shape = 'u32[144,128]{1,0:T(1,128)}', space=vmem, size = 0x12000, scoped, tag = 'internal scratch']
  %s0 = inlined_call_operand.vmem [shape: f32[2,8,4], index: 0, kind: input, shape index: {}]
  %s1 = inlined_call_operand.vmem [shape: s32[2,8,4], index: 1, kind: input, shape index: {}]
  %s2 = inlined_call_operand.vmem [shape: f32[3,4,128], index: 2, kind: input, shape index: {}]
  %s3 = inlined_call_operand.hbm [shape: f32[76,128], index: 3, kind: input, shape index: {}]
  %s4 = inlined_call_operand.vmem [shape: f32[8,128], index: 4, kind: input, shape index: {}]
  %s5 = inlined_call_operand.hbm [shape: f32[2,8,128], index: 5, kind: output, shape index: {}]
  %s6 = sld [smem:[#allocation0]]
  $region57: #{tpu_custom_call.1} parent=0
    _
  %s8 = ssub.s32 1, %s6
  %s9 = scalar_select 0, %s8, %s6
  $region1: #{tpu_custom_call.1} parent=0
    #allocation2 [shape = 'u8[40960]{0}', space=vmem, size = 0xa000, scoped, tag = 'input window, operand 3, single buffered']
    #allocation3 [shape = 's32[2]{0}', space=sflag, size = 0x8, scoped, tag = 'scoped memory for tpu_custom_call.1']
    #allocation4 [shape = 's32[2]{0}', space=sflag, size = 0x8, scoped, tag = 'scoped memory for tpu_custom_call.1']
    #allocation5 [shape = 'u8[8192]{0}', space=vmem, size = 0x2000, scoped, tag = 'output window, operand 0']
    %10 = vsyncpa [#allocation3], 0
    %11 = vsyncpa [#allocation4], 0
    %s12 = scalar_lea.sflag [#allocation4], 1
    %13 = vsyncpa %s12, 0
    loop: start=0, step=1, limit=4
    $region2: #{tpu_custom_call.1} parent=1 // loop_pre_header
      _
    $region3: #{tpu_custom_call.1} parent=1 // loop_header
      %s15 = sphi 0, %s19
      %p16 = scmp.ge.s32.totalorder %s15, 4
      %s25 = sphi 0, %s27
      %s28 = sphi 0, %s25
      %s29 = sphi 0, %s28
      %s45 = sphi 0, %s29
      %s51 = sphi 0, %s53
      %s54 = sphi 0, %s51
      %s55 = sphi 0, %s54
      %s71 = sphi 0, %s55
      %s75 = sphi 0, %s75
      %s77 = sphi 0, %s75
      %s78 = sphi 0, %s77
      %s92 = sphi 0, %s78
      %s96 = sphi 0, %s96
      %s98 = sphi 0, %s96
      %s99 = sphi 0, %s98
      %s113 = sphi 0, %s99
      %s117 = sphi 0, %s117
      %s119 = sphi 0, %s117
      %s120 = sphi 0, %s119
      %s134 = sphi 0, %s120
      %s140 = sphi 0, %s142
      %s143 = sphi 0, %s140
      %s144 = sphi 0, %s143
      %s160 = sphi 0, %s144
    $region4: #{tpu_custom_call.1} parent=1 // loop_header_branch
      %18 = sbr.rel (%p16) target = $region8
    $region5: #{tpu_custom_call.1} parent=1 // loop_body
      %s20 = ssub.s32 %s15, 1
      %s21 = ssub.s32 %s15, 2
      %s22 = sadd.s32 %s15, 1
      %s23 = ssub.s32 %s15, %s22
      %p24 = scmp.eq.s32.totalorder %s23, 0
      %s26 = sadd.s32 %s25, 1
      %s27 = scalar_select %p24, %s25, %s26
      %p30 = pneg %p24
      %p31 = scmp.eq.s32.totalorder %s15, 1
      %p32 = por %p30, %p31
      %p33 = scmp.ne.s32.totalorder %s25, %s28
      %p34 = scmp.eq.s32.totalorder %s15, 0
      %p35 = por %p33, %p34
      %p36 = scmp.ne.s32.totalorder %s25, %s28
      %p37 = scmp.eq.s32.totalorder %s20, 1
      %p38 = por %p36, %p37
      %p39 = scmp.ne.s32.totalorder %s28, %s29
      %p40 = scmp.eq.s32.totalorder %s20, 0
      %p41 = por %p39, %p40
      %p42 = scmp.ne.s32.totalorder %s28, %s29
      %p43 = scmp.eq.s32.totalorder %s21, 1
      %p44 = por %p42, %p43
      %p46 = scmp.ne.s32.totalorder %s29, %s45
      %p47 = scmp.eq.s32.totalorder %s21, 0
      %p48 = por %p46, %p47
      %s49 = ssub.s32 %s15, %s22
      %p50 = scmp.eq.s32.totalorder %s49, 0
      %s52 = sadd.s32 %s51, 1
      %s53 = scalar_select %p50, %s51, %s52
      %p56 = pneg %p50
      %p57 = scmp.eq.s32.totalorder %s15, 1
      %p58 = por %p56, %p57
      %p59 = scmp.ne.s32.totalorder %s51, %s54
      %p60 = scmp.eq.s32.totalorder %s15, 0
      %p61 = por %p59, %p60
      %p62 = scmp.ne.s32.totalorder %s51, %s54
      %p63 = scmp.eq.s32.totalorder %s20, 1
      %p64 = por %p62, %p63
      %p65 = scmp.ne.s32.totalorder %s54, %s55
      %p66 = scmp.eq.s32.totalorder %s20, 0
      %p67 = por %p65, %p66
      %p68 = scmp.ne.s32.totalorder %s54, %s55
      %p69 = scmp.eq.s32.totalorder %s21, 1
      %p70 = por %p68, %p69
      %p72 = scmp.ne.s32.totalorder %s55, %s71
      %p73 = scmp.eq.s32.totalorder %s21, 0
      %p74 = por %p72, %p73
      %s76 = sadd.s32 %s75, 1
      %p79 = scmp.eq.s32.totalorder %s15, 1
      %p80 = scmp.ne.s32.totalorder %s75, %s77
      %p81 = scmp.eq.s32.totalorder %s15, 0
      %p82 = por %p80, %p81
      %p83 = scmp.ne.s32.totalorder %s75, %s77
      %p84 = scmp.eq.s32.totalorder %s20, 1
      %p85 = por %p83, %p84
      %p86 = scmp.ne.s32.totalorder %s77, %s78
      %p87 = scmp.eq.s32.totalorder %s20, 0
      %p88 = por %p86, %p87
      %p89 = scmp.ne.s32.totalorder %s77, %s78
      %p90 = scmp.eq.s32.totalorder %s21, 1
      %p91 = por %p89, %p90
      %p93 = scmp.ne.s32.totalorder %s78, %s92
      %p94 = scmp.eq.s32.totalorder %s21, 0
      %p95 = por %p93, %p94
      %s97 = sadd.s32 %s96, 1
      %p100 = scmp.eq.s32.totalorder %s15, 1
      %p101 = scmp.ne.s32.totalorder %s96, %s98
      %p102 = scmp.eq.s32.totalorder %s15, 0
      %p103 = por %p101, %p102
      %p104 = scmp.ne.s32.totalorder %s96, %s98
      %p105 = scmp.eq.s32.totalorder %s20, 1
      %p106 = por %p104, %p105
      %p107 = scmp.ne.s32.totalorder %s98, %s99
      %p108 = scmp.eq.s32.totalorder %s20, 0
      %p109 = por %p107, %p108
      %p110 = scmp.ne.s32.totalorder %s98, %s99
      %p111 = scmp.eq.s32.totalorder %s21, 1
      %p112 = por %p110, %p111
      %p114 = scmp.ne.s32.totalorder %s99, %s113
      %p115 = scmp.eq.s32.totalorder %s21, 0
      %p116 = por %p114, %p115
      %s118 = sadd.s32 %s117, 1
      %p121 = scmp.eq.s32.totalorder %s15, 1
      %p122 = scmp.ne.s32.totalorder %s117, %s119
      %p123 = scmp.eq.s32.totalorder %s15, 0
      %p124 = por %p122, %p123
      %p125 = scmp.ne.s32.totalorder %s117, %s119
      %p126 = scmp.eq.s32.totalorder %s20, 1
      %p127 = por %p125, %p126
      %p128 = scmp.ne.s32.totalorder %s119, %s120
      %p129 = scmp.eq.s32.totalorder %s20, 0
      %p130 = por %p128, %p129
      %p131 = scmp.ne.s32.totalorder %s119, %s120
      %p132 = scmp.eq.s32.totalorder %s21, 1
      %p133 = por %p131, %p132
      %p135 = scmp.ne.s32.totalorder %s120, %s134
      %p136 = scmp.eq.s32.totalorder %s21, 0
      %p137 = por %p135, %p136
      %s138 = ssub.s32 %s15, %s22
      %p139 = scmp.eq.s32.totalorder %s138, 0
      %s141 = sadd.s32 %s140, 1
      %s142 = scalar_select %p139, %s140, %s141
      %p145 = pneg %p139
      %p146 = scmp.eq.s32.totalorder %s15, 1
      %p147 = por %p145, %p146
      %p148 = scmp.ne.s32.totalorder %s140, %s143
      %p149 = scmp.eq.s32.totalorder %s15, 0
      %p150 = por %p148, %p149
      %p151 = scmp.ne.s32.totalorder %s140, %s143
      %p152 = scmp.eq.s32.totalorder %s20, 1
      %p153 = por %p151, %p152
      %p154 = scmp.ne.s32.totalorder %s143, %s144
      %p155 = scmp.eq.s32.totalorder %s20, 0
      %p156 = por %p154, %p155
      %p157 = scmp.ne.s32.totalorder %s143, %s144
      %p158 = scmp.eq.s32.totalorder %s21, 1
      %p159 = por %p157, %p158
      %p161 = scmp.ne.s32.totalorder %s144, %s160
      %p162 = scmp.eq.s32.totalorder %s21, 0
      %p163 = por %p161, %p162
      %p164 = scmp.le.s32.totalorder 1, %s15
      %p165 = scmp.lt.s32.totalorder %s15, 3
      %p166 = pnand %p164, %p165
      %p167 = pneg %p166
      // Predicated region
      $region9: #{tpu_custom_call.1} parent=5 // pred_check
        _
      $region10: #{tpu_custom_call.1} parent=5 // pred_check_branch
        %169 = sbr.rel (%p166) target = $region12
      $region11: #{tpu_custom_call.1} parent=5 // pred_region
        %s170 = ssub.s32 %s15, 1
        // Predicated region
        $region13: #{tpu_custom_call.1} parent=11 // pred_check
          %p171 = pneg %p88
        $region14: #{tpu_custom_call.1} parent=11 // pred_check_branch
          %173 = sbr.rel (%p171) target = $region16
        $region15: #{tpu_custom_call.1} parent=11 // pred_region
          _
        $region16: #{tpu_custom_call.1} parent=11 // pred_fallthru
          _
        // Predicated region
        $region17: #{tpu_custom_call.1} parent=11 // pred_check
          %p174 = pneg %p109
        $region18: #{tpu_custom_call.1} parent=11 // pred_check_branch
          %176 = sbr.rel (%p174) target = $region20
        $region19: #{tpu_custom_call.1} parent=11 // pred_region
          %s178 = ssub.s32 1280, 1280
          %179 = vsyncadd [#allocation3], %s178
          %s180 = sshll.u32 [#allocation2], 4
          %s181 = int_to_ptr.vmem [resolvable:$true] %s180
          %186 = dma.hbm_to_vmem [thread:$0]  %s3, 1280, %s181, [#allocation3], 128, 128, 8
        $region20: #{tpu_custom_call.1} parent=11 // pred_fallthru
          _
        // Predicated region
        $region21: #{tpu_custom_call.1} parent=11 // pred_check
          %p187 = pneg %p130
        $region22: #{tpu_custom_call.1} parent=11 // pred_check_branch
          %189 = sbr.rel (%p187) target = $region24
        $region23: #{tpu_custom_call.1} parent=11 // pred_region
          _
        $region24: #{tpu_custom_call.1} parent=11 // pred_fallthru
          _
      $region12: #{tpu_custom_call.1} parent=5 // pred_fallthru
        _
      %p190 = scmp.lt.s32.totalorder %s15, 2
      // Predicated region
      $region25: #{tpu_custom_call.1} parent=5 // pred_check
        %p191 = pneg %p190
      $region26: #{tpu_custom_call.1} parent=5 // pred_check_branch
        %193 = sbr.rel (%p191) target = $region28
      $region27: #{tpu_custom_call.1} parent=5 // pred_region
        // Predicated region
        $region29: #{tpu_custom_call.1} parent=27 // pred_check
          %p194 = pneg %p35
        $region30: #{tpu_custom_call.1} parent=27 // pred_check_branch
          %196 = sbr.rel (%p194) target = $region32
        $region31: #{tpu_custom_call.1} parent=27 // pred_region
          %p197 = scmp.lt.s32.totalorder %s15, 1
          %s198 = scalar_select %p197, %s15, 1
          %s199 = smul.addr %s198, 8
          %s200 = scalar_lea.vmem %s0, %s199
        $region32: #{tpu_custom_call.1} parent=27 // pred_fallthru
          _
        // Predicated region
        $region33: #{tpu_custom_call.1} parent=27 // pred_check
          %p201 = pneg %p61
        $region34: #{tpu_custom_call.1} parent=27 // pred_check_branch
          %203 = sbr.rel (%p201) target = $region36
        $region35: #{tpu_custom_call.1} parent=27 // pred_region
          %p204 = scmp.lt.s32.totalorder %s15, 1
          %s205 = scalar_select %p204, %s15, 1
          %s206 = smul.addr %s205, 8
          %s207 = scalar_lea.vmem %s1, %s206
        $region36: #{tpu_custom_call.1} parent=27 // pred_fallthru
          _
      $region28: #{tpu_custom_call.1} parent=5 // pred_fallthru
        _
      %p208 = scmp.le.s32.totalorder 1, %s15
      %p209 = scmp.lt.s32.totalorder %s15, 3
      %p210 = pnand %p208, %p209
      %p211 = pneg %p210
      // Predicated region
      $region37: #{tpu_custom_call.1} parent=5 // pred_check
        _
      $region38: #{tpu_custom_call.1} parent=5 // pred_check_branch
        %213 = sbr.rel (%p210) target = $region40
      $region39: #{tpu_custom_call.1} parent=5 // pred_region
        %s214 = ssub.s32 %s15, 1
        // Predicated region
        $region41: #{tpu_custom_call.1} parent=39 // pred_check
          %p215 = pneg %p109
        $region42: #{tpu_custom_call.1} parent=39 // pred_check_branch
          %217 = sbr.rel (%p215) target = $region44
        $region43: #{tpu_custom_call.1} parent=39 // pred_region
          %218 = dma.done [#allocation3], 1280
        $region44: #{tpu_custom_call.1} parent=39 // pred_fallthru
          _
        %p219 = scmp.lt.s32.totalorder %s20, 1
        %s220 = scalar_select %p219, %s20, 1
        %s221 = smul.addr %s220, 8
        %s222 = scalar_lea.vmem %s0, %s221
        %p223 = pneg %p41
        %p224 = pneg %p38
        %p225 = scmp.lt.s32.totalorder %s20, 1
        %s226 = scalar_select %p225, %s20, 1
        %s227 = smul.addr %s226, 8
        %s228 = scalar_lea.vmem %s1, %s227
        %p229 = pneg %p67
        %p230 = pneg %p64
        %p231 = pneg %p88
        %p232 = pneg %p85
        %p233 = pneg %p109
        %p234 = pneg %p106
        %p235 = pneg %p130
        %p236 = pneg %p127
        %p237 = pneg %p156
        %p238 = pneg %p153
        %s239 = sand.u32 %s143, 1
        %s240 = scalar_lea.sflag [#allocation4], %s239
        %s241 = sand.u32 %s143, 1
        %s242 = smul.addr %s241, 8
        %s243 = scalar_lea.vmem [#allocation5], %s242
        %p244 = scmp.lt.s32.totalorder %s20, 1
        %s245 = scalar_select %p244, %s20, 1
        %s246 = smul.addr %s245, 8
        %s247 = scalar_lea.vmem %s0, %s246
        %p248 = scmp.lt.s32.totalorder %s20, 1
        %s249 = scalar_select %p248, %s20, 1
        %s250 = smul.addr %s249, 8
        %s251 = scalar_lea.vmem %s1, %s250
        %v252 = vld [vmem:[%s247] sm:$0xff]
        %v254 = vrot.slane %v252, 7
        %vm256 = vcmask 1040384
        %v257 = vsel %vm256, %v254, %v254
        %v258 = vrot.slane %v252, 1
        %vm260 = vcmask 1046528
        %v261 = vsel %vm260, %v258, %v258
        %v262 = vld [vmem:[%s2] sm:$0xf]
        %s263 = scalar_lea.vmem %s2, 4
        %v264 = vld [vmem:[%s263] sm:$0xf]
        %vm265 = vcmask 31744
        %v266 = vsel %vm265, %v252, 0
        %vm268 = vcmask 1043456
        %v270 = vsel %vm268, %v264, 0
        %272 = vmatprep.subr.mxu0 0.0
        %273 = vmatpush1.msra.mxu0 0.0
        %274 = vmatprep.subr.mxu0 0.0
        %275 = vmatpush1.msra.mxu0 0.0
        %276 = vmatprep.subr.mxu0 0.0
        %277 = vmatpush1.msra.mxu0 0.0
        %278 = vmatprep.subr.mxu0 0.0
        %279 = vmatpush1.msra.mxu0 0.0
        %280 = vmatprep.subr.mxu0 0.0
        %281 = vmatpush1.msra.mxu0 0.0
        %282 = vmatprep.subr.mxu0 0.0
        %283 = vmatpush1.msra.mxu0 0.0
        %284 = vmatprep.subr.mxu0 0.0
        %285 = vmatpush1.msra.mxu0 0.0
        %286 = vmatprep.subr.mxu0 0.0
        %287 = vmatpush1.msra.mxu0 0.0
        %288 = vmatprep.subr.mxu0 0.0
        %289 = vmatpush1.msra.mxu0 0.0
        %290 = vmatprep.subr.mxu0 0.0
        %291 = vmatpush1.msra.mxu0 0.0
        %292 = vmatprep.subr.mxu0 0.0
        %293 = vmatpush1.msra.mxu0 0.0
        %294 = vmatprep.subr.mxu0 0.0
        %295 = vmatpush1.msra.mxu0 0.0
        %296 = vmatprep.subr.mxu0 0.0
        %297 = vmatpush1.msra.mxu0 0.0
        %298 = vmatprep.subr.mxu0 0.0
        %299 = vmatpush1.msra.mxu0 0.0
        %300 = vmatprep.subr.mxu0 0.0
        %301 = vmatpush1.msra.mxu0 0.0
        %302 = vmatprep.subr.mxu0 0.0
        %303 = vmatpush1.msra.mxu0 %v270
        %304 = vmatprep.subr.mxu0 0.0
        %305 = vmatpush2.msra.mxu0 0.0
        %306 = vmatprep.subr.mxu0 0.0
        %307 = vmatpush2.msra.mxu0 0.0
        %308 = vmatprep.subr.mxu0 0.0
        %309 = vmatpush2.msra.mxu0 0.0
        %310 = vmatprep.subr.mxu0 0.0
        %311 = vmatpush2.msra.mxu0 0.0
        %312 = vmatprep.subr.mxu0 0.0
        %313 = vmatpush2.msra.mxu0 0.0
        %314 = vmatprep.subr.mxu0 0.0
        %315 = vmatpush2.msra.mxu0 0.0
        %316 = vmatprep.subr.mxu0 0.0
        %317 = vmatpush2.msra.mxu0 0.0
        %318 = vmatprep.subr.mxu0 0.0
        %319 = vmatpush2.msra.mxu0 0.0
        %320 = vmatprep.subr.mxu0 0.0
        %321 = vmatpush2.msra.mxu0 0.0
        %322 = vmatprep.subr.mxu0 0.0
        %323 = vmatpush2.msra.mxu0 0.0
        %324 = vmatprep.subr.mxu0 0.0
        %325 = vmatpush2.msra.mxu0 0.0
        %326 = vmatprep.subr.mxu0 0.0
        %327 = vmatpush2.msra.mxu0 0.0
        %328 = vmatprep.subr.mxu0 0.0
        %329 = vmatpush2.msra.mxu0 0.0
        %330 = vmatprep.subr.mxu0 0.0
        %331 = vmatpush2.msra.mxu0 0.0
        %332 = vmatprep.subr.mxu0 0.0
        %333 = vmatpush2.msra.mxu0 0.0
        %334 = vmatprep.subr.mxu0 0.0
        %335 = vmatpush2.msra.mxu0 0.0
        %336 = vmatprep.mubr.f32.mxu0 0.0
        %337 = vmatmul.mubr.f32.gmra.mxu0 %v266
        %v338 = vpop.f32.mrf.mxu0
        %v339 = vadd.f32 0.0, %v338
        %v340 = vpop.f32.mrf.mxu0
        %341 = vdwg.mxu0
        %v343 = vsel %vm265, %v257, 0
        %v346 = vsel %vm268, %v262, 0
        %348 = vmatprep.subr.mxu0 0.0
        %349 = vmatpush1.msra.mxu0 0.0
        %350 = vmatprep.subr.mxu0 0.0
        %351 = vmatpush1.msra.mxu0 0.0
        %352 = vmatprep.subr.mxu0 0.0
        %353 = vmatpush1.msra.mxu0 0.0
        %354 = vmatprep.subr.mxu0 0.0
        %355 = vmatpush1.msra.mxu0 0.0
        %356 = vmatprep.subr.mxu0 0.0
        %357 = vmatpush1.msra.mxu0 0.0
        %358 = vmatprep.subr.mxu0 0.0
        %359 = vmatpush1.msra.mxu0 0.0
        %360 = vmatprep.subr.mxu0 0.0
        %361 = vmatpush1.msra.mxu0 0.0
        %362 = vmatprep.subr.mxu0 0.0
        %363 = vmatpush1.msra.mxu0 0.0
        %364 = vmatprep.subr.mxu0 0.0
        %365 = vmatpush1.msra.mxu0 0.0
        %366 = vmatprep.subr.mxu0 0.0
        %367 = vmatpush1.msra.mxu0 0.0
        %368 = vmatprep.subr.mxu0 0.0
        %369 = vmatpush1.msra.mxu0 0.0
        %370 = vmatprep.subr.mxu0 0.0
        %371 = vmatpush1.msra.mxu0 0.0
        %372 = vmatprep.subr.mxu0 0.0
        %373 = vmatpush1.msra.mxu0 0.0
        %374 = vmatprep.subr.mxu0 0.0
        %375 = vmatpush1.msra.mxu0 0.0
        %376 = vmatprep.subr.mxu0 0.0
        %377 = vmatpush1.msra.mxu0 0.0
        %378 = vmatprep.subr.mxu0 0.0
        %379 = vmatpush1.msra.mxu0 %v346
        %380 = vmatprep.subr.mxu0 0.0
        %381 = vmatpush2.msra.mxu0 0.0
        %382 = vmatprep.subr.mxu0 0.0
        %383 = vmatpush2.msra.mxu0 0.0
        %384 = vmatprep.subr.mxu0 0.0
        %385 = vmatpush2.msra.mxu0 0.0
        %386 = vmatprep.subr.mxu0 0.0
        %387 = vmatpush2.msra.mxu0 0.0
        %388 = vmatprep.subr.mxu0 0.0
        %389 = vmatpush2.msra.mxu0 0.0
        %390 = vmatprep.subr.mxu0 0.0
        %391 = vmatpush2.msra.mxu0 0.0
        %392 = vmatprep.subr.mxu0 0.0
        %393 = vmatpush2.msra.mxu0 0.0
        %394 = vmatprep.subr.mxu0 0.0
        %395 = vmatpush2.msra.mxu0 0.0
        %396 = vmatprep.subr.mxu0 0.0
        %397 = vmatpush2.msra.mxu0 0.0
        %398 = vmatprep.subr.mxu0 0.0
        %399 = vmatpush2.msra.mxu0 0.0
        %400 = vmatprep.subr.mxu0 0.0
        %401 = vmatpush2.msra.mxu0 0.0
        %402 = vmatprep.subr.mxu0 0.0
        %403 = vmatpush2.msra.mxu0 0.0
        %404 = vmatprep.subr.mxu0 0.0
        %405 = vmatpush2.msra.mxu0 0.0
        %406 = vmatprep.subr.mxu0 0.0
        %407 = vmatpush2.msra.mxu0 0.0
        %408 = vmatprep.subr.mxu0 0.0
        %409 = vmatpush2.msra.mxu0 0.0
        %410 = vmatprep.subr.mxu0 0.0
        %411 = vmatpush2.msra.mxu0 0.0
        %412 = vmatprep.mubr.f32.mxu0 0.0
        %413 = vmatmul.mubr.f32.gmra.mxu0 %v343
        %v414 = vpop.f32.mrf.mxu0
        %v415 = vadd.f32 %v339, %v414
        %v416 = vpop.f32.mrf.mxu0
        %417 = vdwg.mxu0
        %s418 = scalar_lea.vmem %s2, 8
        %v419 = vld [vmem:[%s418] sm:$0xf]
        %v421 = vsel %vm265, %v261, 0
        %v424 = vsel %vm268, %v419, 0
        %426 = vmatprep.subr.mxu0 0.0
        %427 = vmatpush1.msra.mxu0 0.0
        %428 = vmatprep.subr.mxu0 0.0
        %429 = vmatpush1.msra.mxu0 0.0
        %430 = vmatprep.subr.mxu0 0.0
        %431 = vmatpush1.msra.mxu0 0.0
        %432 = vmatprep.subr.mxu0 0.0
        %433 = vmatpush1.msra.mxu0 0.0
        %434 = vmatprep.subr.mxu0 0.0
        %435 = vmatpush1.msra.mxu0 0.0
        %436 = vmatprep.subr.mxu0 0.0
        %437 = vmatpush1.msra.mxu0 0.0
        %438 = vmatprep.subr.mxu0 0.0
        %439 = vmatpush1.msra.mxu0 0.0
        %440 = vmatprep.subr.mxu0 0.0
        %441 = vmatpush1.msra.mxu0 0.0
        %442 = vmatprep.subr.mxu0 0.0
        %443 = vmatpush1.msra.mxu0 0.0
        %444 = vmatprep.subr.mxu0 0.0
        %445 = vmatpush1.msra.mxu0 0.0
        %446 = vmatprep.subr.mxu0 0.0
        %447 = vmatpush1.msra.mxu0 0.0
        %448 = vmatprep.subr.mxu0 0.0
        %449 = vmatpush1.msra.mxu0 0.0
        %450 = vmatprep.subr.mxu0 0.0
        %451 = vmatpush1.msra.mxu0 0.0
        %452 = vmatprep.subr.mxu0 0.0
        %453 = vmatpush1.msra.mxu0 0.0
        %454 = vmatprep.subr.mxu0 0.0
        %455 = vmatpush1.msra.mxu0 0.0
        %456 = vmatprep.subr.mxu0 0.0
        %457 = vmatpush1.msra.mxu0 %v424
        %458 = vmatprep.subr.mxu0 0.0
        %459 = vmatpush2.msra.mxu0 0.0
        %460 = vmatprep.subr.mxu0 0.0
        %461 = vmatpush2.msra.mxu0 0.0
        %462 = vmatprep.subr.mxu0 0.0
        %463 = vmatpush2.msra.mxu0 0.0
        %464 = vmatprep.subr.mxu0 0.0
        %465 = vmatpush2.msra.mxu0 0.0
        %466 = vmatprep.subr.mxu0 0.0
        %467 = vmatpush2.msra.mxu0 0.0
        %468 = vmatprep.subr.mxu0 0.0
        %469 = vmatpush2.msra.mxu0 0.0
        %470 = vmatprep.subr.mxu0 0.0
        %471 = vmatpush2.msra.mxu0 0.0
        %472 = vmatprep.subr.mxu0 0.0
        %473 = vmatpush2.msra.mxu0 0.0
        %474 = vmatprep.subr.mxu0 0.0
        %475 = vmatpush2.msra.mxu0 0.0
        %476 = vmatprep.subr.mxu0 0.0
        %477 = vmatpush2.msra.mxu0 0.0
        %478 = vmatprep.subr.mxu0 0.0
        %479 = vmatpush2.msra.mxu0 0.0
        %480 = vmatprep.subr.mxu0 0.0
        %481 = vmatpush2.msra.mxu0 0.0
        %482 = vmatprep.subr.mxu0 0.0
        %483 = vmatpush2.msra.mxu0 0.0
        %484 = vmatprep.subr.mxu0 0.0
        %485 = vmatpush2.msra.mxu0 0.0
        %486 = vmatprep.subr.mxu0 0.0
        %487 = vmatpush2.msra.mxu0 0.0
        %488 = vmatprep.subr.mxu0 0.0
        %489 = vmatpush2.msra.mxu0 0.0
        %490 = vmatprep.mubr.f32.mxu0 0.0
        %491 = vmatmul.mubr.f32.gmra.mxu0 %v421
        %v492 = vpop.f32.mrf.mxu0
        %v493 = vadd.f32 0.0, %v492
        %v494 = vpop.f32.mrf.mxu0
        %495 = vdwg.mxu0
        %v496 = vadd.f32 %v415, %v493
        %v497 = vld [vmem:[%s251] sm:$0xff]
        %v498 = vlaneseq
        %v499 = vand.u32 %v498, 127
        %500 = vset.pattern.permute.xlu0 0
        %501 = vperm.xlu0 %500, %v497
        %v502 = vpop.permute.xlu0 %501
        %vm503 = vcmp.eq.s32.totalorder %v499, %v502
        %504 = vset.pattern.permute.xlu0 1
        %505 = vperm.xlu0 %504, %v497
        %v506 = vpop.permute.xlu0 %505
        %vm507 = vcmp.eq.s32.totalorder %v499, %v506
        %vm508 = vmor %vm503, %vm507
        %509 = vset.pattern.permute.xlu0 2
        %510 = vperm.xlu0 %509, %v497
        %v511 = vpop.permute.xlu0 %510
        %vm512 = vcmp.eq.s32.totalorder %v499, %v511
        %vm513 = vmor %vm508, %vm512
        %514 = vset.pattern.permute.xlu0 3
        %515 = vperm.xlu0 %514, %v497
        %v516 = vpop.permute.xlu0 %515
        %vm517 = vcmp.eq.s32.totalorder %v499, %v516
        %vm518 = vmor %vm513, %vm517
        %v519 = vsel %vm518, 1, 0
        %v520 = vcvt.s32.f32 %v519
        %v521 = vld [vmem:[#allocation2] sm:$0xff]
        %v522 = vld [vmem:[#allocation2 + $0x8] sm:$0xff]
        %v523 = vld [vmem:[#allocation2 + $0x10] sm:$0xff]
        %v524 = vld [vmem:[#allocation2 + $0x18] sm:$0xff]
        %v525 = vld [vmem:[#allocation2 + $0x20] sm:$0xff]
        %v526 = vld [vmem:[#allocation2 + $0x28] sm:$0xff]
        %v527 = vld [vmem:[#allocation2 + $0x30] sm:$0xff]
        %v528 = vld [vmem:[#allocation2 + $0x38] sm:$0xff]
        %v529 = vld [vmem:[#allocation2 + $0x40] sm:$0xff]
        %v530 = vld [vmem:[#allocation2 + $0x48] sm:$0xf]
        %vm531 = vcmask 621568
        %v533 = vsel %vm531, %v520, 0
        %v536 = vsel %vm268, %v530, 0
        %538 = vmatprep.subr.mxu0 0.0
        %539 = vmatpush1.msra.mxu0 0.0
        %540 = vmatprep.subr.mxu0 0.0
        %541 = vmatpush1.msra.mxu0 0.0
        %542 = vmatprep.subr.mxu0 0.0
        %543 = vmatpush1.msra.mxu0 0.0
        %544 = vmatprep.subr.mxu0 0.0
        %545 = vmatpush1.msra.mxu0 0.0
        %546 = vmatprep.subr.mxu0 0.0
        %547 = vmatpush1.msra.mxu0 0.0
        %548 = vmatprep.subr.mxu0 0.0
        %549 = vmatpush1.msra.mxu0 0.0
        %550 = vmatprep.subr.mxu0 0.0
        %551 = vmatpush1.msra.mxu0 %v536
        %552 = vmatprep.subr.mxu0 0.0
        %553 = vmatpush1.msra.mxu0 %v529
        %554 = vmatprep.subr.mxu0 0.0
        %555 = vmatpush1.msra.mxu0 %v528
        %556 = vmatprep.subr.mxu0 0.0
        %557 = vmatpush1.msra.mxu0 %v527
        %558 = vmatprep.subr.mxu0 0.0
        %559 = vmatpush1.msra.mxu0 %v526
        %560 = vmatprep.subr.mxu0 0.0
        %561 = vmatpush1.msra.mxu0 %v525
        %562 = vmatprep.subr.mxu0 0.0
        %563 = vmatpush1.msra.mxu0 %v524
        %564 = vmatprep.subr.mxu0 0.0
        %565 = vmatpush1.msra.mxu0 %v523
        %566 = vmatprep.subr.mxu0 0.0
        %567 = vmatpush1.msra.mxu0 %v522
        %568 = vmatprep.subr.mxu0 0.0
        %569 = vmatpush1.msra.mxu0 %v521
        %570 = vmatprep.subr.mxu0 0.0
        %571 = vmatpush2.msra.mxu0 0.0
        %572 = vmatprep.subr.mxu0 0.0
        %573 = vmatpush2.msra.mxu0 0.0
        %574 = vmatprep.subr.mxu0 0.0
        %575 = vmatpush2.msra.mxu0 0.0
        %576 = vmatprep.subr.mxu0 0.0
        %577 = vmatpush2.msra.mxu0 0.0
        %578 = vmatprep.subr.mxu0 0.0
        %579 = vmatpush2.msra.mxu0 0.0
        %580 = vmatprep.subr.mxu0 0.0
        %581 = vmatpush2.msra.mxu0 0.0
        %582 = vmatprep.subr.mxu0 0.0
        %583 = vmatpush2.msra.mxu0 0.0
        %584 = vmatprep.subr.mxu0 0.0
        %585 = vmatpush2.msra.mxu0 0.0
        %586 = vmatprep.subr.mxu0 0.0
        %587 = vmatpush2.msra.mxu0 0.0
        %588 = vmatprep.subr.mxu0 0.0
        %589 = vmatpush2.msra.mxu0 0.0
        %590 = vmatprep.subr.mxu0 0.0
        %591 = vmatpush2.msra.mxu0 0.0
        %592 = vmatprep.subr.mxu0 0.0
        %593 = vmatpush2.msra.mxu0 0.0
        %594 = vmatprep.subr.mxu0 0.0
        %595 = vmatpush2.msra.mxu0 0.0
        %596 = vmatprep.subr.mxu0 0.0
        %597 = vmatpush2.msra.mxu0 0.0
        %598 = vmatprep.subr.mxu0 0.0
        %599 = vmatpush2.msra.mxu0 0.0
        %600 = vmatprep.subr.mxu0 0.0
        %601 = vmatpush2.msra.mxu0 0.0
        %602 = vmatprep.mubr.f32.mxu0 0.0
        %603 = vmatmul.mubr.f32.gmra.mxu0 %v533
        %v604 = vpop.f32.mrf.mxu0
        %v605 = vadd.f32 0.0, %v604
        %v606 = vpop.f32.mrf.mxu0
        %607 = vdwg.mxu0
        %v608 = vadd.f32 %v496, %v605
        %v609 = vld [vmem:[%s4] sm:$0xff]
        %v610 = vadd.f32 %v608, %v609
        %611 = vst [vmem:[%s243] sm:$0xff] %v610
        %s612 = sand.u32 %s143, 1
        %s613 = scalar_lea.sflag [#allocation4], %s612
        %s614 = sand.u32 %s143, 1
        %s615 = smul.addr %s614, 8
        %s616 = scalar_lea.vmem [#allocation5], %s615
        // Predicated region
        $region45: #{tpu_custom_call.1} parent=39 // pred_check
          %p617 = pneg %p153
        $region46: #{tpu_custom_call.1} parent=39 // pred_check_branch
          %619 = sbr.rel (%p617) target = $region48
        $region47: #{tpu_custom_call.1} parent=39 // pred_region
          %s621 = ssub.s32 128, 128
          %622 = vsyncadd %s613, %s621
          %s623 = smul.addr %s20, 128
          %s624 = scalar_lea.hbm %s5, %s623
          %s626 = sshll.u32 %s616, 4
          %s627 = int_to_ptr.vmem [resolvable:$true] %s626
          %629 = dma.vmem_to_hbm [thread:$0]  %s627, 128, %s624, %s613
        $region48: #{tpu_custom_call.1} parent=39 // pred_fallthru
          _
      $region40: #{tpu_custom_call.1} parent=5 // pred_fallthru
        _
      %p630 = scmp.le.s32.totalorder 2, %s15
      // Predicated region
      $region49: #{tpu_custom_call.1} parent=5 // pred_check
        %p631 = pneg %p630
      $region50: #{tpu_custom_call.1} parent=5 // pred_check_branch
        %633 = sbr.rel (%p631) target = $region52
      $region51: #{tpu_custom_call.1} parent=5 // pred_region
        %s634 = ssub.s32 %s15, 2
        // Predicated region
        $region53: #{tpu_custom_call.1} parent=51 // pred_check
          %p635 = pneg %p159
        $region54: #{tpu_custom_call.1} parent=51 // pred_check_branch
          %637 = sbr.rel (%p635) target = $region56
        $region55: #{tpu_custom_call.1} parent=51 // pred_region
          %s638 = sand.u32 %s144, 1
          %s639 = scalar_lea.sflag [#allocation4], %s638
          %s640 = sand.u32 %s144, 1
          %s641 = smul.addr %s640, 8
          %s642 = scalar_lea.vmem [#allocation5], %s641
          %643 = dma.done %s639, 128
        $region56: #{tpu_custom_call.1} parent=51 // pred_fallthru
          _
      $region52: #{tpu_custom_call.1} parent=5 // pred_fallthru
        _
    $region6: #{tpu_custom_call.1} parent=1 // loop_footer
      %s19 = sadd.s32 1, %s15
    $region7: #{tpu_custom_call.1} parent=1 // loop_footer_branch
      %14 = sbr.rel target = $region3
    $region8: #{tpu_custom_call.1} parent=1 // loop_exit
      _
    %644 = vsyncpa [#allocation3], 1
    %s645 = scalar_lea.sflag [#allocation3], 1
    %646 = vsyncpa %s645, 1
    %647 = vsyncpa [#allocation4], 1
    %s648 = scalar_lea.sflag [#allocation4], 1
    %649 = vsyncpa %s648, 1

</llo_original>
